<compile_context>
chip_gen: v6e
topology: v6e:2x2x1
jax: 0.10.0
libtpu: 0.0.40
codegen_flags: <defaults>
</compile_context>

<pallas_src>
import functools
import math

import jax
import jax.numpy as jnp
from jax.experimental import pallas as pl
from jax.experimental.pallas import tpu as pltpu

# Safe on v5e/v6e (128 MiB physical VMEM) and v7x (64 MiB physical).
_VMEM_LIMIT = 64 * 1024 * 1024


def _cparams(*semantics):
    return pltpu.CompilerParams(dimension_semantics=semantics,
                                vmem_limit_bytes=_VMEM_LIMIT)


def _row_tile(m, target):
    """Row tile: full m when small, else a fixed multiple of 8.

    m need not divide: Pallas masks the partial tail block, so pipelining and
    megacore sharding are preserved for any M (fixes the old full-M fallback).
    """
    if m <= target:
        return m
    return max(8, (target // 8) * 8)


def _round_up(n, m):
    return ((n + m - 1) // m) * m


# ----------------------------- Pallas kernels ------------------------------

def _linear_kernel(x_ref, w_ref, b_ref, o_ref, *, act):
    y = jnp.dot(x_ref[...].astype(jnp.bfloat16), w_ref[...],
                preferred_element_type=jnp.float32) + b_ref[...]
    if act == "relu":
        y = jnp.maximum(y, 0.0)
    elif act == "leaky_relu":
        y = jnp.where(y > 0, y, 0.01 * y)   # PyTorch LeakyReLU default slope
    o_ref[...] = y.astype(o_ref.dtype)


def linear(x, w, b, act="none", tm=512):
    """y = act(x @ w + b); rows tiled ('parallel'), bf16 weight resident."""
    M, K = x.shape
    _, N = w.shape
    tm = _row_tile(M, tm)
    return pl.pallas_call(
        functools.partial(_linear_kernel, act=act),
        out_shape=jax.ShapeDtypeStruct((M, N), x.dtype),
        grid=(pl.cdiv(M, tm),),
        in_specs=[
            pl.BlockSpec((tm, K), lambda i: (i, 0)),
            pl.BlockSpec((K, N), lambda i: (0, 0)),
            pl.BlockSpec((1, N), lambda i: (0, 0)),
        ],
        out_specs=pl.BlockSpec((tm, N), lambda i: (i, 0)),
        compiler_params=_cparams("parallel"),
    )(x, w, b.reshape(1, N))


def _ffnn1_pe_kernel(x_ref, w_ref, b_ref, pe_ref, o_ref):
    # relu(x @ w + b) + positional encoding, fused.
    y = jnp.dot(x_ref[0].astype(jnp.bfloat16), w_ref[...],
                preferred_element_type=jnp.float32) + b_ref[...]
    y = jnp.maximum(y, 0.0)
    o_ref[0] = (y + pe_ref[...]).astype(o_ref.dtype)


def ffnn1_pos(x, w, b, pe, ts_target=256):
    # x: (B, S, d_in) batch-first; pe: (S, D). Grid (B, S-tiles), both parallel.
    B, S, d_in = x.shape
    D = w.shape[1]
    ts = _row_tile(S, ts_target)
    return pl.pallas_call(
        _ffnn1_pe_kernel,
        out_shape=jax.ShapeDtypeStruct((B, S, D), x.dtype),
        grid=(B, pl.cdiv(S, ts)),
        in_specs=[
            pl.BlockSpec((1, ts, d_in), lambda bi, si: (bi, si, 0)),
            pl.BlockSpec((d_in, D), lambda bi, si: (0, 0)),
            pl.BlockSpec((1, D), lambda bi, si: (0, 0)),
            pl.BlockSpec((ts, D), lambda bi, si: (si, 0)),
        ],
        out_specs=pl.BlockSpec((1, ts, D), lambda bi, si: (bi, si, 0)),
        compiler_params=_cparams("parallel", "parallel"),
    )(x, w, b.reshape(1, D), pe)


def _mha_res_ln_kernel(x_ref, wq_ref, wk_ref, wv_ref, bq_ref, bk_ref, bv_ref,
                       wo_ref, bo_ref, g_ref, beta_ref, o_ref, acc_ref,
                       *, scale, eps):
    # One (batch, head) step: fused QKV proj -> attention -> out-proj, with the
    # head axis reducing into acc_ref; residual + LayerNorm on the last head.
    hi = pl.program_id(1)

    @pl.when(hi == 0)
    def _():
        acc_ref[...] = jnp.zeros_like(acc_ref)

    xb = x_ref[0].astype(jnp.bfloat16)                              # (S, D)
    q = jnp.dot(xb, wq_ref[0], preferred_element_type=jnp.float32) + bq_ref[0]
    k = jnp.dot(xb, wk_ref[0], preferred_element_type=jnp.float32) + bk_ref[0]
    v = jnp.dot(xb, wv_ref[0], preferred_element_type=jnp.float32) + bv_ref[0]
    # scores: contract on dh directly (no transpose), bf16 MXU, f32 acc
    s = jax.lax.dot_general(q.astype(jnp.bfloat16), k.astype(jnp.bfloat16),
                            (((1,), (1,)), ((), ())),
                            preferred_element_type=jnp.float32) * scale
    s = s - jnp.max(s, axis=-1, keepdims=True)
    p = jnp.exp(s)
    p = p * pl.reciprocal(jnp.sum(p, axis=-1, keepdims=True), approx=True)
    ctx = jnp.dot(p.astype(jnp.bfloat16), v.astype(jnp.bfloat16),
                  preferred_element_type=jnp.float32)               # (S, dh)
    acc_ref[...] += jnp.dot(ctx.astype(jnp.bfloat16), wo_ref[0],
                            preferred_element_type=jnp.float32)     # (S, D)

    @pl.when(hi == pl.num_programs(1) - 1)
    def _():
        z = acc_ref[...] + bo_ref[...] + x_ref[0].astype(jnp.float32)
        mean = jnp.mean(z, axis=-1, keepdims=True)
        var = jnp.mean((z - mean) ** 2, axis=-1, keepdims=True)
        zn = (z - mean) * jax.lax.rsqrt(var + eps)
        o_ref[0] = (zn * g_ref[...] + beta_ref[...]).astype(o_ref.dtype)


def mha_res_ln(x, wq, wk, wv, bq, bk, bv, wo, bo, gamma, beta, n_head,
               eps=1e-5):
    # x: (B, S, D). Per-head weights: (n_head, D, dh) / biases (n_head, 1, dh),
    # out-proj weights (n_head, dh, D) -> each head is a lane-aligned block.
    # TODO(synk): for very long S add a flash-style kv-tiled variant
    # (grid (B, head, kv-block), online softmax) to bound the SxS score tile
    # in v7x's 64 MiB VMEM.
    B, S, D = x.shape
    dh = D // n_head
    scale = 1.0 / math.sqrt(dh)
    return pl.pallas_call(
        functools.partial(_mha_res_ln_kernel, scale=scale, eps=eps),
        out_shape=jax.ShapeDtypeStruct((B, S, D), x.dtype),
        grid=(B, n_head),
        in_specs=[
            pl.BlockSpec((1, S, D), lambda b, h: (b, 0, 0)),
            pl.BlockSpec((1, D, dh), lambda b, h: (h, 0, 0)),
            pl.BlockSpec((1, D, dh), lambda b, h: (h, 0, 0)),
            pl.BlockSpec((1, D, dh), lambda b, h: (h, 0, 0)),
            pl.BlockSpec((1, 1, dh), lambda b, h: (h, 0, 0)),
            pl.BlockSpec((1, 1, dh), lambda b, h: (h, 0, 0)),
            pl.BlockSpec((1, 1, dh), lambda b, h: (h, 0, 0)),
            pl.BlockSpec((1, dh, D), lambda b, h: (h, 0, 0)),
            pl.BlockSpec((1, D), lambda b, h: (0, 0)),
            pl.BlockSpec((1, D), lambda b, h: (0, 0)),
            pl.BlockSpec((1, D), lambda b, h: (0, 0)),
        ],
        out_specs=pl.BlockSpec((1, S, D), lambda b, h: (b, 0, 0)),
        scratch_shapes=[pltpu.VMEM((S, D), jnp.float32)],
        compiler_params=_cparams("parallel", "arbitrary"),
    )(x, wq, wk, wv, bq, bk, bv, wo,
      bo.reshape(1, D), gamma.reshape(1, D), beta.reshape(1, D))


def _ffn_res_ln_kernel(y_ref, w1_ref, b1_ref, w2_ref, b2_ref, g_ref, beta_ref,
                       o_ref, *, eps):
    # out = LayerNorm(y + relu(y @ w1 + b1) @ w2 + b2); (tm, d_ff) stays in VMEM.
    y = y_ref[...].astype(jnp.float32)
    h = jnp.dot(y_ref[...].astype(jnp.bfloat16), w1_ref[...],
                preferred_element_type=jnp.float32) + b1_ref[...]
    h = jnp.maximum(h, 0.0)
    z = jnp.dot(h.astype(jnp.bfloat16), w2_ref[...],
                preferred_element_type=jnp.float32) + b2_ref[...]
    z = z + y
    mean = jnp.mean(z, axis=-1, keepdims=True)
    var = jnp.mean((z - mean) ** 2, axis=-1, keepdims=True)
    zn = (z - mean) * jax.lax.rsqrt(var + eps)
    o_ref[...] = (zn * g_ref[...] + beta_ref[...]).astype(o_ref.dtype)


def ffn_res_ln(y, w1, b1, w2, b2, gamma, beta, eps=1e-5, tm=512):
    # TODO(synk): pin the invariant weight specs to single buffering
    # (pipeline_mode=pl.Buffered(1)) once verified safe, to save VMEM on v7x.
    M, D = y.shape
    F = w1.shape[1]
    tm = _row_tile(M, tm)
    return pl.pallas_call(
        functools.partial(_ffn_res_ln_kernel, eps=eps),
        out_shape=jax.ShapeDtypeStruct((M, D), y.dtype),
        grid=(pl.cdiv(M, tm),),
        in_specs=[
            pl.BlockSpec((tm, D), lambda i: (i, 0)),
            pl.BlockSpec((D, F), lambda i: (0, 0)),
            pl.BlockSpec((1, F), lambda i: (0, 0)),
            pl.BlockSpec((F, D), lambda i: (0, 0)),
            pl.BlockSpec((1, D), lambda i: (0, 0)),
            pl.BlockSpec((1, D), lambda i: (0, 0)),
            pl.BlockSpec((1, D), lambda i: (0, 0)),
        ],
        out_specs=pl.BlockSpec((tm, D), lambda i: (i, 0)),
        compiler_params=_cparams("parallel"),
    )(y, w1, b1.reshape(1, F), w2, b2.reshape(1, D),
      gamma.reshape(1, D), beta.reshape(1, D))


def _stats_ffnn3_kernel(x_ref, wm_ref, ws_ref, b_ref, o_ref,
                        sum_ref, sq_ref, *, s_total, ts):
    si = pl.program_id(1)

    @pl.when(si == 0)
    def _():
        sum_ref[...] = jnp.zeros_like(sum_ref)
        sq_ref[...] = jnp.zeros_like(sq_ref)

    x = x_ref[...].astype(jnp.float32)                       # (tb, ts, C)
    # mask the partial S tail so the reduction stays exact for any S
    row = si * ts + jax.lax.broadcasted_iota(jnp.int32, (1, ts, 1), 1)
    x = jnp.where(row < s_total, x, 0.0)
    sum_ref[...] += jnp.sum(x, axis=1)
    sq_ref[...] += jnp.sum(x * x, axis=1)

    @pl.when(si == pl.num_programs(1) - 1)
    def _():
        n = jnp.float32(s_total)
        mean = sum_ref[...] / n
        # unbiased variance, matching torch.std (NaN for S==1, like torch)
        # TODO(synk): one-pass sum/sum-of-squares can cancel catastrophically
        # for large-mean activations; a two-pass / mean-shifted variant would
        # track torch.std more closely at the cost of a second S pass.
        var = (sq_ref[...] - n * mean * mean) / (n - 1.0)
        std = jnp.sqrt(jnp.maximum(var, 0.0))
        # fused FFNN3: concat(mean, std) @ W + b == mean @ W_top + std @ W_bot
        y = (jnp.dot(mean.astype(jnp.bfloat16), wm_ref[...],
                     preferred_element_type=jnp.float32)
             + jnp.dot(std.astype(jnp.bfloat16), ws_ref[...],
                       preferred_element_type=jnp.float32)
             + b_ref[...])
        o_ref[...] = jnp.maximum(y, 0.0).astype(o_ref.dtype)


def stats_pool_ffnn3(x, w_mean, w_std, b, ts_target=256, tb_target=8):
    # x: (B, S, C) -> (B, d_out); grid (B-tiles, S-tiles), S is the trailing
    # "arbitrary" reduction axis, B tiles give parallel work for megacore.
    B, S, C = x.shape
    d_out = w_mean.shape[1]
    ts = _row_tile(S, ts_target)
    tb = B if B <= tb_target else tb_target
    return pl.pallas_call(
        functools.partial(_stats_ffnn3_kernel, s_total=S, ts=ts),
        out_shape=jax.ShapeDtypeStruct((B, d_out), x.dtype),
        grid=(pl.cdiv(B, tb), pl.cdiv(S, ts)),
        in_specs=[
            pl.BlockSpec((tb, ts, C), lambda bi, si: (bi, si, 0)),
            pl.BlockSpec((C, d_out), lambda bi, si: (0, 0)),
            pl.BlockSpec((C, d_out), lambda bi, si: (0, 0)),
            pl.BlockSpec((1, d_out), lambda bi, si: (0, 0)),
        ],
        out_specs=pl.BlockSpec((tb, d_out), lambda bi, si: (bi, 0)),
        scratch_shapes=[pltpu.VMEM((tb, C), jnp.float32),
                        pltpu.VMEM((tb, C), jnp.float32)],
        compiler_params=_cparams("parallel", "arbitrary"),
    )(x, w_mean, w_std, b.reshape(1, d_out))


# --------------------------- model glue (plain JAX) ------------------------

def sinusoidal_positional_encoding(seq_len, d_model):
    position = jnp.arange(seq_len, dtype=jnp.float32)[:, None]
    div_term = jnp.exp(jnp.arange(0, d_model, 2, dtype=jnp.float32)
                       * (-math.log(10000.0) / d_model))
    pe = jnp.zeros((seq_len, d_model), dtype=jnp.float32)
    pe = pe.at[:, 0::2].set(jnp.sin(position * div_term))
    pe = pe.at[:, 1::2].set(jnp.cos(position * div_term))
    return pe                                                # (S, d_model)


def init_params(key, d_input, d_model, n_layers, n_head, d_pool, d_out, d_ff):
    def dense(k, fan_in, fan_out):
        kw, kb = jax.random.split(k)
        bound = 1.0 / math.sqrt(fan_in)
        w = jax.random.uniform(kw, (fan_in, fan_out), jnp.float32, -bound, bound)
        bb = jax.random.uniform(kb, (fan_out,), jnp.float32, -bound, bound)
        return w, bb

    dh = d_model // n_head
    d_pool_pad = _round_up(d_pool, 128)   # lane-dense FFNN2 output / pool input

    keys = jax.random.split(key, 3 + n_layers)
    params = {}
    w1f, b1f = dense(keys[0], d_input, d_model)
    params["ffnn1_w"] = w1f.astype(jnp.bfloat16)
    params["ffnn1_b"] = b1f

    w2f, b2f = dense(keys[1], d_model, d_pool)
    params["ffnn2_w"] = jnp.pad(
        w2f, ((0, 0), (0, d_pool_pad - d_pool))).astype(jnp.bfloat16)
    params["ffnn2_b"] = jnp.pad(b2f, (0, d_pool_pad - d_pool))

    w3f, b3f = dense(keys[2], 2 * d_pool, d_out)
    # split once (mean rows / std rows), zero-pad rows for the padded channels
    params["ffnn3_w_mean"] = jnp.pad(
        w3f[:d_pool], ((0, d_pool_pad - d_pool), (0, 0))).astype(jnp.bfloat16)
    params["ffnn3_w_std"] = jnp.pad(
        w3f[d_pool:], ((0, d_pool_pad - d_pool), (0, 0))).astype(jnp.bfloat16)
    params["ffnn3_b"] = b3f

    layers = []
    for l in range(n_layers):
        lk = jax.random.split(keys[3 + l], 4)
        w_qkv, b_qkv = dense(lk[0], d_model, 3 * d_model)
        # (D, 3D) -> lane-aligned per-head blocks (n_head, D, dh) for q/k/v
        w_qkv = w_qkv.reshape(d_model, 3, n_head, dh)
        b_qkv = b_qkv.reshape(3, n_head, dh)
        wq = jnp.transpose(w_qkv[:, 0], (1, 0, 2)).astype(jnp.bfloat16)
        wk = jnp.transpose(w_qkv[:, 1], (1, 0, 2)).astype(jnp.bfloat16)
        wv = jnp.transpose(w_qkv[:, 2], (1, 0, 2)).astype(jnp.bfloat16)
        bq = b_qkv[0][:, None, :]                            # (n_head, 1, dh)
        bk = b_qkv[1][:, None, :]
        bv = b_qkv[2][:, None, :]
        wo, bo = dense(lk[1], d_model, d_model)
        wo_h = wo.reshape(n_head, dh, d_model).astype(jnp.bfloat16)
        w1, b1 = dense(lk[2], d_model, d_ff)
        w2, b2 = dense(lk[3], d_ff, d_model)
        layers.append(dict(
            wq=wq, wk=wk, wv=wv, bq=bq, bk=bk, bv=bv, wo=wo_h, bo=bo,
            w1=w1.astype(jnp.bfloat16), b1=b1,
            w2=w2.astype(jnp.bfloat16), b2=b2,
            ln1_g=jnp.ones((d_model,), jnp.float32),
            ln1_b=jnp.zeros((d_model,), jnp.float32),
            ln2_g=jnp.ones((d_model,), jnp.float32),
            ln2_b=jnp.zeros((d_model,), jnp.float32),
        ))
    params["layers"] = layers
    return params


def transformer_encoder_layer(h, p, n_head):
    # post-norm TransformerEncoderLayer (norm_first=False), ReLU FFN, no dropout
    B, S, D = h.shape
    y = mha_res_ln(h, p["wq"], p["wk"], p["wv"], p["bq"], p["bk"], p["bv"],
                   p["wo"], p["bo"], p["ln1_g"], p["ln1_b"], n_head)
    y = ffn_res_ln(y.reshape(B * S, D), p["w1"], p["b1"], p["w2"], p["b2"],
                   p["ln2_g"], p["ln2_b"]).reshape(B, S, D)
    return y


def svector_forward(params, x, n_head):
    # x: (S, B, d_input) seq-first (PyTorch batch_first=False convention).
    S, B, d_input = x.shape
    xb = jnp.transpose(x, (1, 0, 2))            # batch-first internal layout
    d_model = params["ffnn1_w"].shape[1]
    pe = sinusoidal_positional_encoding(S, d_model)
    # FFNN1 (Linear+ReLU) with positional-encoding add fused (dropout = id)
    h = ffnn1_pos(xb, params["ffnn1_w"], params["ffnn1_b"], pe)  # (B, S, D)
    for p in params["layers"]:
        h = transformer_encoder_layer(h, p, n_head)
    # FFNN2: Linear + LeakyReLU (output lane-padded to a multiple of 128)
    d_pool_pad = params["ffnn2_w"].shape[1]
    h2 = linear(h.reshape(B * S, d_model), params["ffnn2_w"], params["ffnn2_b"],
                act="leaky_relu").reshape(B, S, d_pool_pad)
    # Statistics pooling over time + FFNN3 (Linear+ReLU) fused -> (B, d_out)
    out = stats_pool_ffnn3(h2, params["ffnn3_w_mean"], params["ffnn3_w_std"],
                           params["ffnn3_b"])
    return out


# ------------------------------------ main ----------------------------------

if __name__ == "__main__":
    # Small shapes consistent with the module (scaled down from d_input=30,
    # d_model=512, n_head=8, n_layers=6, d_output_FFNN=[512,1500,512]).
    S, B = 8, 2
    d_input, d_model, n_head, n_layers = 16, 32, 4, 2
    d_pool, d_out, d_ff = 48, 32, 64
    # TODO(synk): the PyTorch module's `d_feedforward=1024` arg is never passed
    # to TransformerEncoderLayer (it uses the default 2048); d_ff is scaled
    # down here consistently with the other demo dims.

    key = jax.random.PRNGKey(0)
    kp, kx = jax.random.split(key)
    params = init_params(kp, d_input, d_model, n_layers, n_head, d_pool,
                         d_out, d_ff)
    x = jax.random.normal(kx, (S, B, d_input), dtype=jnp.float32)

    fwd = jax.jit(functools.partial(svector_forward, n_head=n_head))
    out = fwd(params, x)
    jax.block_until_ready(out)
    assert out.shape == (B, d_out) and out.dtype == jnp.float32
    print("KERNEL_OK")
</pallas_src>

<mosaic_0001>
module attributes {stable_mosaic.version = 11 : i64} {
  func.func @_ffnn1_pe_kernel(%arg0: i32, %arg1: i32, %arg2: memref<1x8x16xf32, #tpu.memory_space<vmem>>, %arg3: memref<16x32xbf16, #tpu.memory_space<vmem>>, %arg4: memref<1x32xf32, #tpu.memory_space<vmem>>, %arg5: memref<8x32xf32, #tpu.memory_space<vmem>>, %arg6: memref<1x8x32xf32, #tpu.memory_space<vmem>>) attributes {dimension_semantics = [#tpu.dimension_semantics<parallel>, #tpu.dimension_semantics<parallel>], iteration_bounds = array<i64: 2, 1>, scalar_prefetch = 0 : i64, scratch_operands = 0 : i64, tpu.core_type = #tpu.core_type<tc>, window_params = [{transform_indices = @transform_0, window_bounds = array<i64: 1, 8, 16>}, {pipeline_mode = #tpu.pipeline_mode<synchronous>, transform_indices = @transform_1, window_bounds = array<i64: 16, 32>}, {pipeline_mode = #tpu.pipeline_mode<synchronous>, transform_indices = @transform_2, window_bounds = array<i64: 1, 32>}, {transform_indices = @transform_3, window_bounds = array<i64: 8, 32>}, {transform_indices = @transform_4, window_bounds = array<i64: 1, 8, 32>}]} {
    %c0 = arith.constant 0 : index
    %c0_0 = arith.constant 0 : index
    %c0_1 = arith.constant 0 : index
    %0 = vector.load %arg2[%c0, %c0_0, %c0_1] : memref<1x8x16xf32, #tpu.memory_space<vmem>>, vector<1x8x16xf32>
    %1 = vector.shape_cast %0 : vector<1x8x16xf32> to vector<8x16xf32>
    %2 = arith.truncf %1 : vector<8x16xf32> to vector<8x16xbf16>
    %c0_2 = arith.constant 0 : index
    %c0_3 = arith.constant 0 : index
    %3 = vector.load %arg3[%c0_2, %c0_3] : memref<16x32xbf16, #tpu.memory_space<vmem>>, vector<16x32xbf16>
    %cst = arith.constant dense<0.000000e+00> : vector<8x32xf32>
    %4 = tpu.matmul %2, %3, %cst {dimension_numbers = #tpu.dot_dimension_numbers<[1], [0], [0], [1], [0, 0, 1, 1], [], []>} : vector<8x16xbf16>, vector<16x32xbf16>, vector<8x32xf32> -> vector<8x32xf32>
    %c0_4 = arith.constant 0 : index
    %c0_5 = arith.constant 0 : index
    %5 = vector.load %arg4[%c0_4, %c0_5] : memref<1x32xf32, #tpu.memory_space<vmem>>, vector<1x32xf32>
    %6 = vector.broadcast %5 : vector<1x32xf32> to vector<8x32xf32>
    %7 = arith.addf %4, %6 : vector<8x32xf32>
    %cst_6 = arith.constant 0.000000e+00 : f32
    %8 = vector.broadcast %cst_6 : f32 to vector<8x32xf32>
    %9 = arith.maximumf %7, %8 : vector<8x32xf32>
    %c0_7 = arith.constant 0 : index
    %c0_8 = arith.constant 0 : index
    %10 = vector.load %arg5[%c0_7, %c0_8] : memref<8x32xf32, #tpu.memory_space<vmem>>, vector<8x32xf32>
    %11 = arith.addf %9, %10 : vector<8x32xf32>
    %c0_9 = arith.constant 0 : index
    %c0_10 = arith.constant 0 : index
    %c0_11 = arith.constant 0 : index
    %12 = vector.load %arg6[%c0_9, %c0_10, %c0_11] : memref<1x8x32xf32, #tpu.memory_space<vmem>>, vector<1x8x32xf32>
    %13 = vector.shape_cast %12 : vector<1x8x32xf32> to vector<8x32xf32>
    %14 = vector.shape_cast %11 : vector<8x32xf32> to vector<1x8x32xf32>
    tpu.vector_store %arg6[%c0_9, %c0_10, %c0_11], %14 {strides = array<i32>} : memref<1x8x32xf32, #tpu.memory_space<vmem>>, vector<1x8x32xf32>,
    return
  }
  func.func @transform_0(%arg0: i32, %arg1: i32) -> (i32, i32, i32) {
    %c0_i32 = arith.constant 0 : i32
    %c0_i32_0 = arith.constant 0 : i32
    return %arg0, %arg1, %c0_i32 : i32, i32, i32
  }
  func.func @transform_1(%arg0: i32, %arg1: i32) -> (i32, i32) {
    %c0_i32 = arith.constant 0 : i32
    %c0_i32_0 = arith.constant 0 : i32
    %c0_i32_1 = arith.constant 0 : i32
    return %c0_i32, %c0_i32_0 : i32, i32
  }
  func.func @transform_2(%arg0: i32, %arg1: i32) -> (i32, i32) {
    %c0_i32 = arith.constant 0 : i32
    %c0_i32_0 = arith.constant 0 : i32
    %c0_i32_1 = arith.constant 0 : i32
    return %c0_i32, %c0_i32_0 : i32, i32
  }
  func.func @transform_3(%arg0: i32, %arg1: i32) -> (i32, i32) {
    %c0_i32 = arith.constant 0 : i32
    %c0_i32_0 = arith.constant 0 : i32
    return %arg1, %c0_i32 : i32, i32
  }
  func.func @transform_4(%arg0: i32, %arg1: i32) -> (i32, i32, i32) {
    %c0_i32 = arith.constant 0 : i32
    %c0_i32_0 = arith.constant 0 : i32
    return %arg0, %arg1, %c0_i32 : i32, i32, i32
  }
}

module attributes {stable_mosaic.version = 11 : i64} {
  func.func @_linear_kernel(%arg0: i32, %arg1: memref<16x32xf32, #tpu.memory_space<vmem>>, %arg2: memref<32x128xbf16, #tpu.memory_space<vmem>>, %arg3: memref<1x128xf32, #tpu.memory_space<vmem>>, %arg4: memref<16x128xf32, #tpu.memory_space<vmem>>) attributes {dimension_semantics = [#tpu.dimension_semantics<parallel>], iteration_bounds = array<i64: 1>, scalar_prefetch = 0 : i64, scratch_operands = 0 : i64, tpu.core_type = #tpu.core_type<tc>, window_params = [{transform_indices = @transform_0, window_bounds = array<i64: 16, 32>}, {pipeline_mode = #tpu.pipeline_mode<synchronous>, transform_indices = @transform_1, window_bounds = array<i64: 32, 128>}, {pipeline_mode = #tpu.pipeline_mode<synchronous>, transform_indices = @transform_2, window_bounds = array<i64: 1, 128>}, {transform_indices = @transform_3, window_bounds = array<i64: 16, 128>}]} {
    %c0 = arith.constant 0 : index
    %c0_0 = arith.constant 0 : index
    %0 = vector.load %arg1[%c0, %c0_0] : memref<16x32xf32, #tpu.memory_space<vmem>>, vector<16x32xf32>
    %1 = arith.truncf %0 : vector<16x32xf32> to vector<16x32xbf16>
    %c0_1 = arith.constant 0 : index
    %c0_2 = arith.constant 0 : index
    %2 = vector.load %arg2[%c0_1, %c0_2] : memref<32x128xbf16, #tpu.memory_space<vmem>>, vector<32x128xbf16>
    %cst = arith.constant dense<0.000000e+00> : vector<16x128xf32>
    %3 = tpu.matmul %1, %2, %cst {dimension_numbers = #tpu.dot_dimension_numbers<[1], [0], [0], [1], [0, 0, 1, 1], [], []>} : vector<16x32xbf16>, vector<32x128xbf16>, vector<16x128xf32> -> vector<16x128xf32>
    %c0_3 = arith.constant 0 : index
    %c0_4 = arith.constant 0 : index
    %4 = vector.load %arg3[%c0_3, %c0_4] : memref<1x128xf32, #tpu.memory_space<vmem>>, vector<1x128xf32>
    %5 = vector.broadcast %4 : vector<1x128xf32> to vector<16x128xf32>
    %6 = arith.addf %3, %5 : vector<16x128xf32>
    %cst_5 = arith.constant 0.000000e+00 : f32
    %7 = vector.broadcast %cst_5 : f32 to vector<16x128xf32>
    %8 = arith.cmpf ogt, %6, %7 : vector<16x128xf32>
    %cst_6 = arith.constant 0.00999999977 : f32
    %9 = vector.broadcast %cst_6 : f32 to vector<16x128xf32>
    %10 = arith.mulf %9, %6 : vector<16x128xf32>
    %11 = arith.select %8, %6, %10 : vector<16x128xi1>, vector<16x128xf32>
    %c0_7 = arith.constant 0 : index
    %c0_8 = arith.constant 0 : index
    %12 = vector.load %arg4[%c0_7, %c0_8] : memref<16x128xf32, #tpu.memory_space<vmem>>, vector<16x128xf32>
    tpu.vector_store %arg4[%c0_7, %c0_8], %11 {strides = array<i32>} : memref<16x128xf32, #tpu.memory_space<vmem>>, vector<16x128xf32>,
    return
  }
  func.func @transform_0(%arg0: i32) -> (i32, i32) {
    %c0_i32 = arith.constant 0 : i32
    %c0_i32_0 = arith.constant 0 : i32
    return %arg0, %c0_i32 : i32, i32
  }
  func.func @transform_1(%arg0: i32) -> (i32, i32) {
    %c0_i32 = arith.constant 0 : i32
    %c0_i32_0 = arith.constant 0 : i32
    %c0_i32_1 = arith.constant 0 : i32
    return %c0_i32, %c0_i32_0 : i32, i32
  }
  func.func @transform_2(%arg0: i32) -> (i32, i32) {
    %c0_i32 = arith.constant 0 : i32
    %c0_i32_0 = arith.constant 0 : i32
    %c0_i32_1 = arith.constant 0 : i32
    return %c0_i32, %c0_i32_0 : i32, i32
  }
  func.func @transform_3(%arg0: i32) -> (i32, i32) {
    %c0_i32 = arith.constant 0 : i32
    %c0_i32_0 = arith.constant 0 : i32
    return %arg0, %c0_i32 : i32, i32
  }
}

module attributes {stable_mosaic.version = 11 : i64} {
  func.func @_mha_res_ln_kernel(%arg0: i32, %arg1: i32, %arg2: memref<1x8x32xf32, #tpu.memory_space<vmem>>, %arg3: memref<1x32x8xbf16, #tpu.memory_space<vmem>>, %arg4: memref<1x32x8xbf16, #tpu.memory_space<vmem>>, %arg5: memref<1x32x8xbf16, #tpu.memory_space<vmem>>, %arg6: memref<1x1x8xf32, #tpu.memory_space<vmem>>, %arg7: memref<1x1x8xf32, #tpu.memory_space<vmem>>, %arg8: memref<1x1x8xf32, #tpu.memory_space<vmem>>, %arg9: memref<1x8x32xbf16, #tpu.memory_space<vmem>>, %arg10: memref<1x32xf32, #tpu.memory_space<vmem>>, %arg11: memref<1x32xf32, #tpu.memory_space<vmem>>, %arg12: memref<1x32xf32, #tpu.memory_space<vmem>>, %arg13: memref<1x8x32xf32, #tpu.memory_space<vmem>>, %arg14: memref<8x32xf32, #tpu.memory_space<vmem>>) attributes {dimension_semantics = [#tpu.dimension_semantics<parallel>, #tpu.dimension_semantics<arbitrary>], iteration_bounds = array<i64: 2, 4>, scalar_prefetch = 0 : i64, scratch_operands = 1 : i64, tpu.core_type = #tpu.core_type<tc>, window_params = [{transform_indices = @transform_0, window_bounds = array<i64: 1, 8, 32>}, {transform_indices = @transform_1, window_bounds = array<i64: 1, 32, 8>}, {transform_indices = @transform_2, window_bounds = array<i64: 1, 32, 8>}, {transform_indices = @transform_3, window_bounds = array<i64: 1, 32, 8>}, {transform_indices = @transform_4, window_bounds = array<i64: 1, 1, 8>}, {transform_indices = @transform_5, window_bounds = array<i64: 1, 1, 8>}, {transform_indices = @transform_6, window_bounds = array<i64: 1, 1, 8>}, {transform_indices = @transform_7, window_bounds = array<i64: 1, 8, 32>}, {pipeline_mode = #tpu.pipeline_mode<synchronous>, transform_indices = @transform_8, window_bounds = array<i64: 1, 32>}, {pipeline_mode = #tpu.pipeline_mode<synchronous>, transform_indices = @transform_9, window_bounds = array<i64: 1, 32>}, {pipeline_mode = #tpu.pipeline_mode<synchronous>, transform_indices = @transform_10, window_bounds = array<i64: 1, 32>}, {transform_indices = @transform_11, window_bounds = array<i64: 1, 8, 32>}]} {
    %c0_i32 = arith.constant 0 : i32
    %0 = arith.cmpi eq, %arg1, %c0_i32 : i32
    %1 = arith.extui %0 : i1 to i32
    %c0_i32_0 = arith.constant 0 : i32
    %2 = arith.cmpi ne, %1, %c0_i32_0 : i32
    scf.if %2 {
      %cst_37 = arith.constant 0.000000e+00 : f32
      %55 = vector.broadcast %cst_37 : f32 to vector<8x32xf32>
      %c0_38 = arith.constant 0 : index
      %c0_39 = arith.constant 0 : index
      %56 = vector.load %arg14[%c0_38, %c0_39] : memref<8x32xf32, #tpu.memory_space<vmem>>, vector<8x32xf32>
      tpu.vector_store %arg14[%c0_38, %c0_39], %55 {strides = array<i32>} : memref<8x32xf32, #tpu.memory_space<vmem>>, vector<8x32xf32>,
    } else {
    }
    %c0 = arith.constant 0 : index
    %c0_1 = arith.constant 0 : index
    %c0_2 = arith.constant 0 : index
    %3 = vector.load %arg2[%c0, %c0_1, %c0_2] : memref<1x8x32xf32, #tpu.memory_space<vmem>>, vector<1x8x32xf32>
    %4 = vector.shape_cast %3 : vector<1x8x32xf32> to vector<8x32xf32>
    %5 = arith.truncf %4 : vector<8x32xf32> to vector<8x32xbf16>
    %c0_3 = arith.constant 0 : index
    %c0_4 = arith.constant 0 : index
    %c0_5 = arith.constant 0 : index
    %6 = vector.load %arg3[%c0_3, %c0_4, %c0_5] : memref<1x32x8xbf16, #tpu.memory_space<vmem>>, vector<1x32x8xbf16>
    %7 = vector.shape_cast %6 : vector<1x32x8xbf16> to vector<32x8xbf16>
    %cst = arith.constant dense<0.000000e+00> : vector<8x8xf32>
    %8 = tpu.matmul %5, %7, %cst {dimension_numbers = #tpu.dot_dimension_numbers<[1], [0], [0], [1], [0, 0, 1, 1], [], []>} : vector<8x32xbf16>, vector<32x8xbf16>, vector<8x8xf32> -> vector<8x8xf32>
    %c0_6 = arith.constant 0 : index
    %c0_7 = arith.constant 0 : index
    %c0_8 = arith.constant 0 : index
    %9 = vector.load %arg6[%c0_6, %c0_7, %c0_8] : memref<1x1x8xf32, #tpu.memory_space<vmem>>, vector<1x1x8xf32>
    %10 = vector.shape_cast %9 : vector<1x1x8xf32> to vector<1x8xf32>
    %11 = vector.broadcast %10 : vector<1x8xf32> to vector<8x8xf32>
    %12 = arith.addf %8, %11 : vector<8x8xf32>
    %c0_9 = arith.constant 0 : index
    %c0_10 = arith.constant 0 : index
    %c0_11 = arith.constant 0 : index
    %13 = vector.load %arg4[%c0_9, %c0_10, %c0_11] : memref<1x32x8xbf16, #tpu.memory_space<vmem>>, vector<1x32x8xbf16>
    %14 = vector.shape_cast %13 : vector<1x32x8xbf16> to vector<32x8xbf16>
    %cst_12 = arith.constant dense<0.000000e+00> : vector<8x8xf32>
    %15 = tpu.matmul %5, %14, %cst_12 {dimension_numbers = #tpu.dot_dimension_numbers<[1], [0], [0], [1], [0, 0, 1, 1], [], []>} : vector<8x32xbf16>, vector<32x8xbf16>, vector<8x8xf32> -> vector<8x8xf32>
    %c0_13 = arith.constant 0 : index
    %c0_14 = arith.constant 0 : index
    %c0_15 = arith.constant 0 : index
    %16 = vector.load %arg7[%c0_13, %c0_14, %c0_15] : memref<1x1x8xf32, #tpu.memory_space<vmem>>, vector<1x1x8xf32>
    %17 = vector.shape_cast %16 : vector<1x1x8xf32> to vector<1x8xf32>
    %18 = vector.broadcast %17 : vector<1x8xf32> to vector<8x8xf32>
    %19 = arith.addf %15, %18 : vector<8x8xf32>
    %c0_16 = arith.constant 0 : index
    %c0_17 = arith.constant 0 : index
    %c0_18 = arith.constant 0 : index
    %20 = vector.load %arg5[%c0_16, %c0_17, %c0_18] : memref<1x32x8xbf16, #tpu.memory_space<vmem>>, vector<1x32x8xbf16>
    %21 = vector.shape_cast %20 : vector<1x32x8xbf16> to vector<32x8xbf16>
    %cst_19 = arith.constant dense<0.000000e+00> : vector<8x8xf32>
    %22 = tpu.matmul %5, %21, %cst_19 {dimension_numbers = #tpu.dot_dimension_numbers<[1], [0], [0], [1], [0, 0, 1, 1], [], []>} : vector<8x32xbf16>, vector<32x8xbf16>, vector<8x8xf32> -> vector<8x8xf32>
    %c0_20 = arith.constant 0 : index
    %c0_21 = arith.constant 0 : index
    %c0_22 = arith.constant 0 : index
    %23 = vector.load %arg8[%c0_20, %c0_21, %c0_22] : memref<1x1x8xf32, #tpu.memory_space<vmem>>, vector<1x1x8xf32>
    %24 = vector.shape_cast %23 : vector<1x1x8xf32> to vector<1x8xf32>
    %25 = vector.broadcast %24 : vector<1x8xf32> to vector<8x8xf32>
    %26 = arith.addf %22, %25 : vector<8x8xf32>
    %27 = arith.truncf %12 : vector<8x8xf32> to vector<8x8xbf16>
    %28 = arith.truncf %19 : vector<8x8xf32> to vector<8x8xbf16>
    %cst_23 = arith.constant dense<0.000000e+00> : vector<8x8xf32>
    %29 = tpu.matmul %27, %28, %cst_23 {dimension_numbers = #tpu.dot_dimension_numbers<[1], [1], [0], [0], [0, 0, 1, 0], [], []>} : vector<8x8xbf16>, vector<8x8xbf16>, vector<8x8xf32> -> vector<8x8xf32>
    %cst_24 = arith.constant 0.353553385 : f32
    %30 = vector.broadcast %cst_24 : f32 to vector<8x8xf32>
    %31 = arith.mulf %29, %30 : vector<8x8xf32>
    %cst_25 = arith.constant dense<0xFF800000> : vector<8xf32>
    %32 = vector.multi_reduction <maximumf>, %31, %cst_25 [1] : vector<8x8xf32> to vector<8xf32>
    %33 = vector.shape_cast %32 : vector<8xf32> to vector<8x1xf32>
    %34 = vector.broadcast %33 : vector<8x1xf32> to vector<8x8xf32>
    %35 = arith.subf %31, %34 : vector<8x8xf32>
    %36 = math.exp %35 : vector<8x8xf32>
    %cst_26 = arith.constant dense<0.000000e+00> : vector<8xf32>
    %37 = vector.multi_reduction <add>, %36, %cst_26 [1] : vector<8x8xf32> to vector<8xf32>
    %38 = vector.shape_cast %37 : vector<8xf32> to vector<8x1xf32>
    %39 = tpu.reciprocal %38 {approx = true} : vector<8x1xf32> -> vector<8x1xf32>
    %40 = vector.broadcast %39 : vector<8x1xf32> to vector<8x8xf32>
    %41 = arith.mulf %36, %40 : vector<8x8xf32>
    %42 = arith.truncf %41 : vector<8x8xf32> to vector<8x8xbf16>
    %43 = arith.truncf %26 : vector<8x8xf32> to vector<8x8xbf16>
    %cst_27 = arith.constant dense<0.000000e+00> : vector<8x8xf32>
    %44 = tpu.matmul %42, %43, %cst_27 {dimension_numbers = #tpu.dot_dimension_numbers<[1], [0], [0], [1], [0, 0, 1, 1], [], []>} : vector<8x8xbf16>, vector<8x8xbf16>, vector<8x8xf32> -> vector<8x8xf32>
    %c0_28 = arith.constant 0 : index
    %c0_29 = arith.constant 0 : index
    %45 = vector.load %arg14[%c0_28, %c0_29] : memref<8x32xf32, #tpu.memory_space<vmem>>, vector<8x32xf32>
    %46 = arith.truncf %44 : vector<8x8xf32> to vector<8x8xbf16>
    %c0_30 = arith.constant 0 : index
    %c0_31 = arith.constant 0 : index
    %c0_32 = arith.constant 0 : index
    %47 = vector.load %arg9[%c0_30, %c0_31, %c0_32] : memref<1x8x32xbf16, #tpu.memory_space<vmem>>, vector<1x8x32xbf16>
    %48 = vector.shape_cast %47 : vector<1x8x32xbf16> to vector<8x32xbf16>
    %cst_33 = arith.constant dense<0.000000e+00> : vector<8x32xf32>
    %49 = tpu.matmul %46, %48, %cst_33 {dimension_numbers = #tpu.dot_dimension_numbers<[1], [0], [0], [1], [0, 0, 1, 1], [], []>} : vector<8x8xbf16>, vector<8x32xbf16>, vector<8x32xf32> -> vector<8x32xf32>
    %50 = arith.addf %45, %49 : vector<8x32xf32>
    %c0_34 = arith.constant 0 : index
    %c0_35 = arith.constant 0 : index
    %51 = vector.load %arg14[%c0_34, %c0_35] : memref<8x32xf32, #tpu.memory_space<vmem>>, vector<8x32xf32>
    tpu.vector_store %arg14[%c0_34, %c0_35], %50 {strides = array<i32>} : memref<8x32xf32, #tpu.memory_space<vmem>>, vector<8x32xf32>,
    %c3_i32 = arith.constant 3 : i32
    %52 = arith.cmpi eq, %arg1, %c3_i32 : i32
    %53 = arith.extui %52 : i1 to i32
    %c0_i32_36 = arith.constant 0 : i32
    %54 = arith.cmpi ne, %53, %c0_i32_36 : i32
    scf.if %54 {
      %c0_37 = arith.constant 0 : index
      %c0_38 = arith.constant 0 : index
      %55 = vector.load %arg14[%c0_37, %c0_38] : memref<8x32xf32, #tpu.memory_space<vmem>>, vector<8x32xf32>
      %c0_39 = arith.constant 0 : index
      %c0_40 = arith.constant 0 : index
      %56 = vector.load %arg10[%c0_39, %c0_40] : memref<1x32xf32, #tpu.memory_space<vmem>>, vector<1x32xf32>
      %57 = vector.broadcast %56 : vector<1x32xf32> to vector<8x32xf32>
      %58 = arith.addf %55, %57 : vector<8x32xf32>
      %c0_41 = arith.constant 0 : index
      %c0_42 = arith.constant 0 : index
      %c0_43 = arith.constant 0 : index
      %59 = vector.load %arg2[%c0_41, %c0_42, %c0_43] : memref<1x8x32xf32, #tpu.memory_space<vmem>>, vector<1x8x32xf32>
      %60 = vector.shape_cast %59 : vector<1x8x32xf32> to vector<8x32xf32>
      %61 = arith.addf %58, %60 : vector<8x32xf32>
      %cst_44 = arith.constant dense<0.000000e+00> : vector<8xf32>
      %62 = vector.multi_reduction <add>, %61, %cst_44 [1] : vector<8x32xf32> to vector<8xf32>
      %63 = vector.shape_cast %62 : vector<8xf32> to vector<8x1xf32>
      %cst_45 = arith.constant 3.200000e+01 : f32
      %64 = vector.broadcast %cst_45 : f32 to vector<8x1xf32>
      %65 = arith.divf %63, %64 : vector<8x1xf32>
      %66 = vector.broadcast %65 : vector<8x1xf32> to vector<8x32xf32>
      %67 = arith.subf %61, %66 : vector<8x32xf32>
      %68 = arith.mulf %67, %67 : vector<8x32xf32>
      %cst_46 = arith.constant dense<0.000000e+00> : vector<8xf32>
      %69 = vector.multi_reduction <add>, %68, %cst_46 [1] : vector<8x32xf32> to vector<8xf32>
      %70 = vector.shape_cast %69 : vector<8xf32> to vector<8x1xf32>
      %cst_47 = arith.constant 3.200000e+01 : f32
      %71 = vector.broadcast %cst_47 : f32 to vector<8x1xf32>
      %72 = arith.divf %70, %71 : vector<8x1xf32>
      %73 = vector.broadcast %65 : vector<8x1xf32> to vector<8x32xf32>
      %74 = arith.subf %61, %73 : vector<8x32xf32>
      %cst_48 = arith.constant 9.99999974E-6 : f32
      %75 = vector.broadcast %cst_48 : f32 to vector<8x1xf32>
      %76 = arith.addf %72, %75 : vector<8x1xf32>
      %77 = math.rsqrt %76 : vector<8x1xf32>
      %78 = vector.broadcast %77 : vector<8x1xf32> to vector<8x32xf32>
      %79 = arith.mulf %74, %78 : vector<8x32xf32>
      %c0_49 = arith.constant 0 : index
      %c0_50 = arith.constant 0 : index
      %80 = vector.load %arg11[%c0_49, %c0_50] : memref<1x32xf32, #tpu.memory_space<vmem>>, vector<1x32xf32>
      %81 = vector.broadcast %80 : vector<1x32xf32> to vector<8x32xf32>
      %82 = arith.mulf %79, %81 : vector<8x32xf32>
      %c0_51 = arith.constant 0 : index
      %c0_52 = arith.constant 0 : index
      %83 = vector.load %arg12[%c0_51, %c0_52] : memref<1x32xf32, #tpu.memory_space<vmem>>, vector<1x32xf32>
      %84 = vector.broadcast %83 : vector<1x32xf32> to vector<8x32xf32>
      %85 = arith.addf %82, %84 : vector<8x32xf32>
      %c0_53 = arith.constant 0 : index
      %c0_54 = arith.constant 0 : index
      %c0_55 = arith.constant 0 : index
      %86 = vector.load %arg13[%c0_53, %c0_54, %c0_55] : memref<1x8x32xf32, #tpu.memory_space<vmem>>, vector<1x8x32xf32>
      %87 = vector.shape_cast %86 : vector<1x8x32xf32> to vector<8x32xf32>
      %88 = vector.shape_cast %85 : vector<8x32xf32> to vector<1x8x32xf32>
      tpu.vector_store %arg13[%c0_53, %c0_54, %c0_55], %88 {strides = array<i32>} : memref<1x8x32xf32, #tpu.memory_space<vmem>>, vector<1x8x32xf32>,
    } else {
    }
    return
  }
  func.func @transform_0(%arg0: i32, %arg1: i32) -> (i32, i32, i32) {
    %c0_i32 = arith.constant 0 : i32
    %c0_i32_0 = arith.constant 0 : i32
    %c0_i32_1 = arith.constant 0 : i32
    return %arg0, %c0_i32, %c0_i32_0 : i32, i32, i32
  }
  func.func @transform_1(%arg0: i32, %arg1: i32) -> (i32, i32, i32) {
    %c0_i32 = arith.constant 0 : i32
    %c0_i32_0 = arith.constant 0 : i32
    %c0_i32_1 = arith.constant 0 : i32
    return %arg1, %c0_i32, %c0_i32_0 : i32, i32, i32
  }
  func.func @transform_2(%arg0: i32, %arg1: i32) -> (i32, i32, i32) {
    %c0_i32 = arith.constant 0 : i32
    %c0_i32_0 = arith.constant 0 : i32
    %c0_i32_1 = arith.constant 0 : i32
    return %arg1, %c0_i32, %c0_i32_0 : i32, i32, i32
  }
  func.func @transform_3(%arg0: i32, %arg1: i32) -> (i32, i32, i32) {
    %c0_i32 = arith.constant 0 : i32
    %c0_i32_0 = arith.constant 0 : i32
    %c0_i32_1 = arith.constant 0 : i32
    return %arg1, %c0_i32, %c0_i32_0 : i32, i32, i32
  }
  func.func @transform_4(%arg0: i32, %arg1: i32) -> (i32, i32, i32) {
    %c0_i32 = arith.constant 0 : i32
    %c0_i32_0 = arith.constant 0 : i32
    %c0_i32_1 = arith.constant 0 : i32
    return %arg1, %c0_i32, %c0_i32_0 : i32, i32, i32
  }
  func.func @transform_5(%arg0: i32, %arg1: i32) -> (i32, i32, i32) {
    %c0_i32 = arith.constant 0 : i32
    %c0_i32_0 = arith.constant 0 : i32
    %c0_i32_1 = arith.constant 0 : i32
    return %arg1, %c0_i32, %c0_i32_0 : i32, i32, i32
  }
  func.func @transform_6(%arg0: i32, %arg1: i32) -> (i32, i32, i32) {
    %c0_i32 = arith.constant 0 : i32
    %c0_i32_0 = arith.constant 0 : i32
    %c0_i32_1 = arith.constant 0 : i32
    return %arg1, %c0_i32, %c0_i32_0 : i32, i32, i32
  }
  func.func @transform_7(%arg0: i32, %arg1: i32) -> (i32, i32, i32) {
    %c0_i32 = arith.constant 0 : i32
    %c0_i32_0 = arith.constant 0 : i32
    %c0_i32_1 = arith.constant 0 : i32
    return %arg1, %c0_i32, %c0_i32_0 : i32, i32, i32
  }
  func.func @transform_8(%arg0: i32, %arg1: i32) -> (i32, i32) {
    %c0_i32 = arith.constant 0 : i32
    %c0_i32_0 = arith.constant 0 : i32
    %c0_i32_1 = arith.constant 0 : i32
    return %c0_i32, %c0_i32_0 : i32, i32
  }
  func.func @transform_9(%arg0: i32, %arg1: i32) -> (i32, i32) {
    %c0_i32 = arith.constant 0 : i32
    %c0_i32_0 = arith.constant 0 : i32
    %c0_i32_1 = arith.constant 0 : i32
    return %c0_i32, %c0_i32_0 : i32, i32
  }
  func.func @transform_10(%arg0: i32, %arg1: i32) -> (i32, i32) {
    %c0_i32 = arith.constant 0 : i32
    %c0_i32_0 = arith.constant 0 : i32
    %c0_i32_1 = arith.constant 0 : i32
    return %c0_i32, %c0_i32_0 : i32, i32
  }
  func.func @transform_11(%arg0: i32, %arg1: i32) -> (i32, i32, i32) {
    %c0_i32 = arith.constant 0 : i32
    %c0_i32_0 = arith.constant 0 : i32
    %c0_i32_1 = arith.constant 0 : i32
    return %arg0, %c0_i32, %c0_i32_0 : i32, i32, i32
  }
}

module attributes {stable_mosaic.version = 11 : i64} {
  func.func @_ffn_res_ln_kernel(%arg0: i32, %arg1: memref<16x32xf32, #tpu.memory_space<vmem>>, %arg2: memref<32x64xbf16, #tpu.memory_space<vmem>>, %arg3: memref<1x64xf32, #tpu.memory_space<vmem>>, %arg4: memref<64x32xbf16, #tpu.memory_space<vmem>>, %arg5: memref<1x32xf32, #tpu.memory_space<vmem>>, %arg6: memref<1x32xf32, #tpu.memory_space<vmem>>, %arg7: memref<1x32xf32, #tpu.memory_space<vmem>>, %arg8: memref<16x32xf32, #tpu.memory_space<vmem>>) attributes {dimension_semantics = [#tpu.dimension_semantics<parallel>], iteration_bounds = array<i64: 1>, scalar_prefetch = 0 : i64, scratch_operands = 0 : i64, tpu.core_type = #tpu.core_type<tc>, window_params = [{transform_indices = @transform_0, window_bounds = array<i64: 16, 32>}, {pipeline_mode = #tpu.pipeline_mode<synchronous>, transform_indices = @transform_1, window_bounds = array<i64: 32, 64>}, {pipeline_mode = #tpu.pipeline_mode<synchronous>, transform_indices = @transform_2, window_bounds = array<i64: 1, 64>}, {pipeline_mode = #tpu.pipeline_mode<synchronous>, transform_indices = @transform_3, window_bounds = array<i64: 64, 32>}, {pipeline_mode = #tpu.pipeline_mode<synchronous>, transform_indices = @transform_4, window_bounds = array<i64: 1, 32>}, {pipeline_mode = #tpu.pipeline_mode<synchronous>, transform_indices = @transform_5, window_bounds = array<i64: 1, 32>}, {pipeline_mode = #tpu.pipeline_mode<synchronous>, transform_indices = @transform_6, window_bounds = array<i64: 1, 32>}, {transform_indices = @transform_7, window_bounds = array<i64: 16, 32>}]} {
    %c0 = arith.constant 0 : index
    %c0_0 = arith.constant 0 : index
    %0 = vector.load %arg1[%c0, %c0_0] : memref<16x32xf32, #tpu.memory_space<vmem>>, vector<16x32xf32>
    %c0_1 = arith.constant 0 : index
    %c0_2 = arith.constant 0 : index
    %1 = vector.load %arg1[%c0_1, %c0_2] : memref<16x32xf32, #tpu.memory_space<vmem>>, vector<16x32xf32>
    %2 = arith.truncf %1 : vector<16x32xf32> to vector<16x32xbf16>
    %c0_3 = arith.constant 0 : index
    %c0_4 = arith.constant 0 : index
    %3 = vector.load %arg2[%c0_3, %c0_4] : memref<32x64xbf16, #tpu.memory_space<vmem>>, vector<32x64xbf16>
    %cst = arith.constant dense<0.000000e+00> : vector<16x64xf32>
    %4 = tpu.matmul %2, %3, %cst {dimension_numbers = #tpu.dot_dimension_numbers<[1], [0], [0], [1], [0, 0, 1, 1], [], []>} : vector<16x32xbf16>, vector<32x64xbf16>, vector<16x64xf32> -> vector<16x64xf32>
    %c0_5 = arith.constant 0 : index
    %c0_6 = arith.constant 0 : index
    %5 = vector.load %arg3[%c0_5, %c0_6] : memref<1x64xf32, #tpu.memory_space<vmem>>, vector<1x64xf32>
    %6 = vector.broadcast %5 : vector<1x64xf32> to vector<16x64xf32>
    %7 = arith.addf %4, %6 : vector<16x64xf32>
    %cst_7 = arith.constant 0.000000e+00 : f32
    %8 = vector.broadcast %cst_7 : f32 to vector<16x64xf32>
    %9 = arith.maximumf %7, %8 : vector<16x64xf32>
    %10 = arith.truncf %9 : vector<16x64xf32> to vector<16x64xbf16>
    %c0_8 = arith.constant 0 : index
    %c0_9 = arith.constant 0 : index
    %11 = vector.load %arg4[%c0_8, %c0_9] : memref<64x32xbf16, #tpu.memory_space<vmem>>, vector<64x32xbf16>
    %cst_10 = arith.constant dense<0.000000e+00> : vector<16x32xf32>
    %12 = tpu.matmul %10, %11, %cst_10 {dimension_numbers = #tpu.dot_dimension_numbers<[1], [0], [0], [1], [0, 0, 1, 1], [], []>} : vector<16x64xbf16>, vector<64x32xbf16>, vector<16x32xf32> -> vector<16x32xf32>
    %c0_11 = arith.constant 0 : index
    %c0_12 = arith.constant 0 : index
    %13 = vector.load %arg5[%c0_11, %c0_12] : memref<1x32xf32, #tpu.memory_space<vmem>>, vector<1x32xf32>
    %14 = vector.broadcast %13 : vector<1x32xf32> to vector<16x32xf32>
    %15 = arith.addf %12, %14 : vector<16x32xf32>
    %16 = arith.addf %15, %0 : vector<16x32xf32>
    %cst_13 = arith.constant dense<0.000000e+00> : vector<16xf32>
    %17 = vector.multi_reduction <add>, %16, %cst_13 [1] : vector<16x32xf32> to vector<16xf32>
    %18 = vector.shape_cast %17 : vector<16xf32> to vector<16x1xf32>
    %cst_14 = arith.constant 3.200000e+01 : f32
    %19 = vector.broadcast %cst_14 : f32 to vector<16x1xf32>
    %20 = arith.divf %18, %19 : vector<16x1xf32>
    %21 = vector.broadcast %20 : vector<16x1xf32> to vector<16x32xf32>
    %22 = arith.subf %16, %21 : vector<16x32xf32>
    %23 = arith.mulf %22, %22 : vector<16x32xf32>
    %cst_15 = arith.constant dense<0.000000e+00> : vector<16xf32>
    %24 = vector.multi_reduction <add>, %23, %cst_15 [1] : vector<16x32xf32> to vector<16xf32>
    %25 = vector.shape_cast %24 : vector<16xf32> to vector<16x1xf32>
    %cst_16 = arith.constant 3.200000e+01 : f32
    %26 = vector.broadcast %cst_16 : f32 to vector<16x1xf32>
    %27 = arith.divf %25, %26 : vector<16x1xf32>
    %28 = vector.broadcast %20 : vector<16x1xf32> to vector<16x32xf32>
    %29 = arith.subf %16, %28 : vector<16x32xf32>
    %cst_17 = arith.constant 9.99999974E-6 : f32
    %30 = vector.broadcast %cst_17 : f32 to vector<16x1xf32>
    %31 = arith.addf %27, %30 : vector<16x1xf32>
    %32 = math.rsqrt %31 : vector<16x1xf32>
    %33 = vector.broadcast %32 : vector<16x1xf32> to vector<16x32xf32>
    %34 = arith.mulf %29, %33 : vector<16x32xf32>
    %c0_18 = arith.constant 0 : index
    %c0_19 = arith.constant 0 : index
    %35 = vector.load %arg6[%c0_18, %c0_19] : memref<1x32xf32, #tpu.memory_space<vmem>>, vector<1x32xf32>
    %36 = vector.broadcast %35 : vector<1x32xf32> to vector<16x32xf32>
    %37 = arith.mulf %34, %36 : vector<16x32xf32>
    %c0_20 = arith.constant 0 : index
    %c0_21 = arith.constant 0 : index
    %38 = vector.load %arg7[%c0_20, %c0_21] : memref<1x32xf32, #tpu.memory_space<vmem>>, vector<1x32xf32>
    %39 = vector.broadcast %38 : vector<1x32xf32> to vector<16x32xf32>
    %40 = arith.addf %37, %39 : vector<16x32xf32>
    %c0_22 = arith.constant 0 : index
    %c0_23 = arith.constant 0 : index
    %41 = vector.load %arg8[%c0_22, %c0_23] : memref<16x32xf32, #tpu.memory_space<vmem>>, vector<16x32xf32>
    tpu.vector_store %arg8[%c0_22, %c0_23], %40 {strides = array<i32>} : memref<16x32xf32, #tpu.memory_space<vmem>>, vector<16x32xf32>,
    return
  }
  func.func @transform_0(%arg0: i32) -> (i32, i32) {
    %c0_i32 = arith.constant 0 : i32
    %c0_i32_0 = arith.constant 0 : i32
    return %arg0, %c0_i32 : i32, i32
  }
  func.func @transform_1(%arg0: i32) -> (i32, i32) {
    %c0_i32 = arith.constant 0 : i32
    %c0_i32_0 = arith.constant 0 : i32
    %c0_i32_1 = arith.constant 0 : i32
    return %c0_i32, %c0_i32_0 : i32, i32
  }
  func.func @transform_2(%arg0: i32) -> (i32, i32) {
    %c0_i32 = arith.constant 0 : i32
    %c0_i32_0 = arith.constant 0 : i32
    %c0_i32_1 = arith.constant 0 : i32
    return %c0_i32, %c0_i32_0 : i32, i32
  }
  func.func @transform_3(%arg0: i32) -> (i32, i32) {
    %c0_i32 = arith.constant 0 : i32
    %c0_i32_0 = arith.constant 0 : i32
    %c0_i32_1 = arith.constant 0 : i32
    return %c0_i32, %c0_i32_0 : i32, i32
  }
  func.func @transform_4(%arg0: i32) -> (i32, i32) {
    %c0_i32 = arith.constant 0 : i32
    %c0_i32_0 = arith.constant 0 : i32
    %c0_i32_1 = arith.constant 0 : i32
    return %c0_i32, %c0_i32_0 : i32, i32
  }
  func.func @transform_5(%arg0: i32) -> (i32, i32) {
    %c0_i32 = arith.constant 0 : i32
    %c0_i32_0 = arith.constant 0 : i32
    %c0_i32_1 = arith.constant 0 : i32
    return %c0_i32, %c0_i32_0 : i32, i32
  }
  func.func @transform_6(%arg0: i32) -> (i32, i32) {
    %c0_i32 = arith.constant 0 : i32
    %c0_i32_0 = arith.constant 0 : i32
    %c0_i32_1 = arith.constant 0 : i32
    return %c0_i32, %c0_i32_0 : i32, i32
  }
  func.func @transform_7(%arg0: i32) -> (i32, i32) {
    %c0_i32 = arith.constant 0 : i32
    %c0_i32_0 = arith.constant 0 : i32
    return %arg0, %c0_i32 : i32, i32
  }
}

module attributes {stable_mosaic.version = 11 : i64} {
  func.func @_stats_ffnn3_kernel(%arg0: i32, %arg1: i32, %arg2: memref<2x8x128xf32, #tpu.memory_space<vmem>>, %arg3: memref<128x32xbf16, #tpu.memory_space<vmem>>, %arg4: memref<128x32xbf16, #tpu.memory_space<vmem>>, %arg5: memref<1x32xf32, #tpu.memory_space<vmem>>, %arg6: memref<2x32xf32, #tpu.memory_space<vmem>>, %arg7: memref<2x128xf32, #tpu.memory_space<vmem>>, %arg8: memref<2x128xf32, #tpu.memory_space<vmem>>) attributes {dimension_semantics = [#tpu.dimension_semantics<parallel>, #tpu.dimension_semantics<arbitrary>], iteration_bounds = array<i64: 1, 1>, scalar_prefetch = 0 : i64, scratch_operands = 2 : i64, tpu.core_type = #tpu.core_type<tc>, window_params = [{transform_indices = @transform_0, window_bounds = array<i64: 2, 8, 128>}, {pipeline_mode = #tpu.pipeline_mode<synchronous>, transform_indices = @transform_1, window_bounds = array<i64: 128, 32>}, {pipeline_mode = #tpu.pipeline_mode<synchronous>, transform_indices = @transform_2, window_bounds = array<i64: 128, 32>}, {pipeline_mode = #tpu.pipeline_mode<synchronous>, transform_indices = @transform_3, window_bounds = array<i64: 1, 32>}, {transform_indices = @transform_4, window_bounds = array<i64: 2, 32>}]} {
    %c0_i32 = arith.constant 0 : i32
    %0 = arith.cmpi eq, %arg1, %c0_i32 : i32
    %1 = arith.extui %0 : i1 to i32
    %c0_i32_0 = arith.constant 0 : i32
    %2 = arith.cmpi ne, %1, %c0_i32_0 : i32
    scf.if %2 {
      %cst_16 = arith.constant 0.000000e+00 : f32
      %26 = vector.broadcast %cst_16 : f32 to vector<2x128xf32>
      %c0_17 = arith.constant 0 : index
      %c0_18 = arith.constant 0 : index
      %27 = vector.load %arg7[%c0_17, %c0_18] : memref<2x128xf32, #tpu.memory_space<vmem>>, vector<2x128xf32>
      tpu.vector_store %arg7[%c0_17, %c0_18], %26 {strides = array<i32>} : memref<2x128xf32, #tpu.memory_space<vmem>>, vector<2x128xf32>,
      %cst_19 = arith.constant 0.000000e+00 : f32
      %28 = vector.broadcast %cst_19 : f32 to vector<2x128xf32>
      %c0_20 = arith.constant 0 : index
      %c0_21 = arith.constant 0 : index
      %29 = vector.load %arg8[%c0_20, %c0_21] : memref<2x128xf32, #tpu.memory_space<vmem>>, vector<2x128xf32>
      tpu.vector_store %arg8[%c0_20, %c0_21], %28 {strides = array<i32>} : memref<2x128xf32, #tpu.memory_space<vmem>>, vector<2x128xf32>,
    } else {
    }
    %c0 = arith.constant 0 : index
    %c0_1 = arith.constant 0 : index
    %c0_2 = arith.constant 0 : index
    %3 = vector.load %arg2[%c0, %c0_1, %c0_2] : memref<2x8x128xf32, #tpu.memory_space<vmem>>, vector<2x8x128xf32>
    %c8_i32 = arith.constant 8 : i32
    %4 = arith.muli %arg1, %c8_i32 : i32
    %5 = tpu.iota {dimensions = array<i32: 1>} : vector<1x8x1xi32>
    %6 = vector.broadcast %4 : i32 to vector<1x8x1xi32>
    %7 = arith.addi %6, %5 : vector<1x8x1xi32>
    %c8_i32_3 = arith.constant 8 : i32
    %8 = vector.broadcast %c8_i32_3 : i32 to vector<1x8x1xi32>
    %9 = arith.cmpi slt, %7, %8 : vector<1x8x1xi32>
    %cst = arith.constant 0.000000e+00 : f32
    %10 = vector.shape_cast %9 : vector<1x8x1xi1> to vector<1x8x1xi1>
    %11 = vector.broadcast %10 : vector<1x8x1xi1> to vector<2x8x128xi1>
    %12 = vector.broadcast %cst : f32 to vector<2x8x128xf32>
    %13 = arith.select %11, %3, %12 : vector<2x8x128xi1>, vector<2x8x128xf32>
    %c0_4 = arith.constant 0 : index
    %c0_5 = arith.constant 0 : index
    %14 = vector.load %arg7[%c0_4, %c0_5] : memref<2x128xf32, #tpu.memory_space<vmem>>, vector<2x128xf32>
    %cst_6 = arith.constant dense<0.000000e+00> : vector<2x128xf32>
    %15 = vector.multi_reduction <add>, %13, %cst_6 [1] : vector<2x8x128xf32> to vector<2x128xf32>
    %16 = arith.addf %14, %15 : vector<2x128xf32>
    %c0_7 = arith.constant 0 : index
    %c0_8 = arith.constant 0 : index
    %17 = vector.load %arg7[%c0_7, %c0_8] : memref<2x128xf32, #tpu.memory_space<vmem>>, vector<2x128xf32>
    tpu.vector_store %arg7[%c0_7, %c0_8], %16 {strides = array<i32>} : memref<2x128xf32, #tpu.memory_space<vmem>>, vector<2x128xf32>,
    %c0_9 = arith.constant 0 : index
    %c0_10 = arith.constant 0 : index
    %18 = vector.load %arg8[%c0_9, %c0_10] : memref<2x128xf32, #tpu.memory_space<vmem>>, vector<2x128xf32>
    %19 = arith.mulf %13, %13 : vector<2x8x128xf32>
    %cst_11 = arith.constant dense<0.000000e+00> : vector<2x128xf32>
    %20 = vector.multi_reduction <add>, %19, %cst_11 [1] : vector<2x8x128xf32> to vector<2x128xf32>
    %21 = arith.addf %18, %20 : vector<2x128xf32>
    %c0_12 = arith.constant 0 : index
    %c0_13 = arith.constant 0 : index
    %22 = vector.load %arg8[%c0_12, %c0_13] : memref<2x128xf32, #tpu.memory_space<vmem>>, vector<2x128xf32>
    tpu.vector_store %arg8[%c0_12, %c0_13], %21 {strides = array<i32>} : memref<2x128xf32, #tpu.memory_space<vmem>>, vector<2x128xf32>,
    %c0_i32_14 = arith.constant 0 : i32
    %23 = arith.cmpi eq, %arg1, %c0_i32_14 : i32
    %24 = arith.extui %23 : i1 to i32
    %c0_i32_15 = arith.constant 0 : i32
    %25 = arith.cmpi ne, %24, %c0_i32_15 : i32
    scf.if %25 {
      %c0_16 = arith.constant 0 : index
      %c0_17 = arith.constant 0 : index
      %26 = vector.load %arg7[%c0_16, %c0_17] : memref<2x128xf32, #tpu.memory_space<vmem>>, vector<2x128xf32>
      %cst_18 = arith.constant 8.000000e+00 : f32
      %27 = vector.broadcast %cst_18 : f32 to vector<2x128xf32>
      %28 = arith.divf %26, %27 : vector<2x128xf32>
      %c0_19 = arith.constant 0 : index
      %c0_20 = arith.constant 0 : index
      %29 = vector.load %arg8[%c0_19, %c0_20] : memref<2x128xf32, #tpu.memory_space<vmem>>, vector<2x128xf32>
      %cst_21 = arith.constant 8.000000e+00 : f32
      %30 = vector.broadcast %cst_21 : f32 to vector<2x128xf32>
      %31 = arith.mulf %30, %28 : vector<2x128xf32>
      %32 = arith.mulf %31, %28 : vector<2x128xf32>
      %33 = arith.subf %29, %32 : vector<2x128xf32>
      %cst_22 = arith.constant 8.000000e+00 : f32
      %cst_23 = arith.constant 1.000000e+00 : f32
      %34 = arith.subf %cst_22, %cst_23 : f32
      %35 = vector.broadcast %34 : f32 to vector<2x128xf32>
      %36 = arith.divf %33, %35 : vector<2x128xf32>
      %cst_24 = arith.constant 0.000000e+00 : f32
      %37 = vector.broadcast %cst_24 : f32 to vector<2x128xf32>
      %38 = arith.maximumf %36, %37 : vector<2x128xf32>
      %39 = math.sqrt %38 : vector<2x128xf32>
      %40 = arith.truncf %28 : vector<2x128xf32> to vector<2x128xbf16>
      %c0_25 = arith.constant 0 : index
      %c0_26 = arith.constant 0 : index
      %41 = vector.load %arg3[%c0_25, %c0_26] : memref<128x32xbf16, #tpu.memory_space<vmem>>, vector<128x32xbf16>
      %cst_27 = arith.constant dense<0.000000e+00> : vector<2x32xf32>
      %42 = tpu.matmul %40, %41, %cst_27 {dimension_numbers = #tpu.dot_dimension_numbers<[1], [0], [0], [1], [0, 0, 1, 1], [], []>} : vector<2x128xbf16>, vector<128x32xbf16>, vector<2x32xf32> -> vector<2x32xf32>
      %43 = arith.truncf %39 : vector<2x128xf32> to vector<2x128xbf16>
      %c0_28 = arith.constant 0 : index
      %c0_29 = arith.constant 0 : index
      %44 = vector.load %arg4[%c0_28, %c0_29] : memref<128x32xbf16, #tpu.memory_space<vmem>>, vector<128x32xbf16>
      %cst_30 = arith.constant dense<0.000000e+00> : vector<2x32xf32>
      %45 = tpu.matmul %43, %44, %cst_30 {dimension_numbers = #tpu.dot_dimension_numbers<[1], [0], [0], [1], [0, 0, 1, 1], [], []>} : vector<2x128xbf16>, vector<128x32xbf16>, vector<2x32xf32> -> vector<2x32xf32>
      %46 = arith.addf %42, %45 : vector<2x32xf32>
      %c0_31 = arith.constant 0 : index
      %c0_32 = arith.constant 0 : index
      %47 = vector.load %arg5[%c0_31, %c0_32] : memref<1x32xf32, #tpu.memory_space<vmem>>, vector<1x32xf32>
      %48 = vector.broadcast %47 : vector<1x32xf32> to vector<2x32xf32>
      %49 = arith.addf %46, %48 : vector<2x32xf32>
      %cst_33 = arith.constant 0.000000e+00 : f32
      %50 = vector.broadcast %cst_33 : f32 to vector<2x32xf32>
      %51 = arith.maximumf %49, %50 : vector<2x32xf32>
      %c0_34 = arith.constant 0 : index
      %c0_35 = arith.constant 0 : index
      %52 = vector.load %arg6[%c0_34, %c0_35] : memref<2x32xf32, #tpu.memory_space<vmem>>, vector<2x32xf32>
      tpu.vector_store %arg6[%c0_34, %c0_35], %51 {strides = array<i32>} : memref<2x32xf32, #tpu.memory_space<vmem>>, vector<2x32xf32>,
    } else {
    }
    return
  }
  func.func @transform_0(%arg0: i32, %arg1: i32) -> (i32, i32, i32) {
    %c0_i32 = arith.constant 0 : i32
    %c0_i32_0 = arith.constant 0 : i32
    return %arg0, %arg1, %c0_i32 : i32, i32, i32
  }
  func.func @transform_1(%arg0: i32, %arg1: i32) -> (i32, i32) {
    %c0_i32 = arith.constant 0 : i32
    %c0_i32_0 = arith.constant 0 : i32
    %c0_i32_1 = arith.constant 0 : i32
    return %c0_i32, %c0_i32_0 : i32, i32
  }
  func.func @transform_2(%arg0: i32, %arg1: i32) -> (i32, i32) {
    %c0_i32 = arith.constant 0 : i32
    %c0_i32_0 = arith.constant 0 : i32
    %c0_i32_1 = arith.constant 0 : i32
    return %c0_i32, %c0_i32_0 : i32, i32
  }
  func.func @transform_3(%arg0: i32, %arg1: i32) -> (i32, i32) {
    %c0_i32 = arith.constant 0 : i32
    %c0_i32_0 = arith.constant 0 : i32
    %c0_i32_1 = arith.constant 0 : i32
    return %c0_i32, %c0_i32_0 : i32, i32
  }
  func.func @transform_4(%arg0: i32, %arg1: i32) -> (i32, i32) {
    %c0_i32 = arith.constant 0 : i32
    %c0_i32_0 = arith.constant 0 : i32
    return %arg0, %c0_i32 : i32, i32
  }
}

</mosaic_0001>

<llo_original>
// kernel: svector_forward.12
$region0: #{svector_forward.12}
  #allocation0 [shape = 'u32[]', space=smem, size = 0x4, offset = 0x4, fixed_abs, tag = 'smem constant byte address 0x4 - core index']
  #allocation1 [shape = 'u32[144,128]{1,0:T(1,128)}', space=vmem, size = 0x12000, scoped, tag = 'internal scratch']
  %s0 = inlined_call_operand.vmem [shape: f32[16,32], index: 0, kind: input, shape index: {}]
  %s1 = inlined_call_operand.vmem [shape: bf16[32,128], index: 1, kind: input, shape index: {}]
  %s2 = inlined_call_operand.vmem [shape: f32[1,128], index: 2, kind: input, shape index: {}]
  %s3 = inlined_call_operand.vmem [shape: f32[16,128], index: 3, kind: output, shape index: {}]
  %s4 = sld [smem:[#allocation0]]
  $region22: #{svector_forward.12} parent=0
    _
  %s6 = ssub.s32 1, %s4
  %s7 = scalar_select 0, %s6, %s4
  // Predicated region
  $region2: #{svector_forward.12} parent=0 // pred_check
    _
  $region3: #{svector_forward.12} parent=0 // pred_check_branch
    %9 = sbr.rel (0) target = $region5
  $region4: #{svector_forward.12} parent=0 // pred_region
    _
  $region5: #{svector_forward.12} parent=0 // pred_fallthru
    _
  // Predicated region
  $region6: #{svector_forward.12} parent=0 // pred_check
    _
  $region7: #{svector_forward.12} parent=0 // pred_check_branch
    %11 = sbr.rel (0) target = $region9
  $region8: #{svector_forward.12} parent=0 // pred_region
    _
  $region9: #{svector_forward.12} parent=0 // pred_fallthru
    _
  // Predicated region
  $region10: #{svector_forward.12} parent=0 // pred_check
    _
  $region11: #{svector_forward.12} parent=0 // pred_check_branch
    %13 = sbr.rel (0) target = $region13
  $region12: #{svector_forward.12} parent=0 // pred_region
    _
  $region13: #{svector_forward.12} parent=0 // pred_fallthru
    _
  %v15 = vld [vmem:[%s0] sm:$0xff]
  %v16 = vld [vmem:[%s0 + $0x8] sm:$0xff]
  %v17 = vpack.c.bf16 %v16, %v15
  %v18 = vld [vmem:[%s1] sm:$0xf]
  %v19 = vld [vmem:[%s1 + $0x4] sm:$0xf]
  %v20 = vld [vmem:[%s1 + $0x8] sm:$0xf]
  %v21 = vld [vmem:[%s1 + $0xc] sm:$0xf]
  %v22 = vld [vmem:[%s2] sm:$0x1]
  %v24 = vlaneseq
  %v25 = vshrl.u32 %v24, 7
  %v26 = vsub.s32 0, %v25
  %v27 = vrot.slane %v22, %v26
  %v33 = vunpack.c.l.b16 %v18
  %v34 = vunpack.c.l.b16 %v19
  %v35 = vunpack.c.l.b16 %v20
  %v36 = vunpack.c.l.b16 %v21
  %v37 = vpack.c.b16 %v34, %v33
  %v38 = vpack.c.b16 %v36, %v35
  %vm41 = vcmask 261120
  %v43 = vsel %vm41, %v17, 0
  %45 = vmatprep.subr.bf16.mxu0 0
  %46 = vmatpush1.bf16.msra.mxu0 0
  %47 = vmatprep.subr.bf16.mxu0 0
  %48 = vmatpush1.bf16.msra.mxu0 0
  %49 = vmatprep.subr.bf16.mxu0 0
  %50 = vmatpush1.bf16.msra.mxu0 0
  %51 = vmatprep.subr.bf16.mxu0 0
  %52 = vmatpush1.bf16.msra.mxu0 0
  %53 = vmatprep.subr.bf16.mxu0 0
  %54 = vmatpush1.bf16.msra.mxu0 0
  %55 = vmatprep.subr.bf16.mxu0 0
  %56 = vmatpush1.bf16.msra.mxu0 0
  %57 = vmatprep.subr.bf16.mxu0 0
  %58 = vmatpush1.bf16.msra.mxu0 %v38
  %59 = vmatprep.subr.bf16.mxu0 0
  %60 = vmatpush1.bf16.msra.mxu0 %v37
  %61 = vmatprep.subr.bf16.mxu0 0
  %62 = vmatpush2.bf16.msra.mxu0 0
  %63 = vmatprep.subr.bf16.mxu0 0
  %64 = vmatpush2.bf16.msra.mxu0 0
  %65 = vmatprep.subr.bf16.mxu0 0
  %66 = vmatpush2.bf16.msra.mxu0 0
  %67 = vmatprep.subr.bf16.mxu0 0
  %68 = vmatpush2.bf16.msra.mxu0 0
  %69 = vmatprep.subr.bf16.mxu0 0
  %70 = vmatpush2.bf16.msra.mxu0 0
  %71 = vmatprep.subr.bf16.mxu0 0
  %72 = vmatpush2.bf16.msra.mxu0 0
  %73 = vmatprep.subr.bf16.mxu0 0
  %74 = vmatpush2.bf16.msra.mxu0 0
  %75 = vmatprep.subr.bf16.mxu0 0
  %76 = vmatpush2.bf16.msra.mxu0 0
  %77 = vmatprep.mubr.bf16.mxu0 0
  %78 = vmatmul.mubr.bf16.gmra.mxu0 %v43
  %v79 = vpop.f32.mrf.mxu0
  %v80 = vadd.f32 %v27, %v79
  %v81 = vpop.f32.mrf.mxu0
  %v82 = vpop.f32.mrf.mxu0
  %v83 = vadd.f32 %v27, %v82
  %v84 = vpop.f32.mrf.mxu0
  %85 = vdwg.mxu0
  %vm86 = vcmp.gt.f32.partialorder %v80, 0.0
  %vm87 = vcmp.gt.f32.partialorder %v83, 0.0
  %v88 = vmul.f32 %v80, 0.01
  %v89 = vmul.f32 %v83, 0.01
  %v90 = vsel %vm86, %v80, %v88
  %v91 = vsel %vm87, %v83, %v89
  %92 = vst [vmem:[%s3] sm:$0xff] %v90
  %93 = vst [vmem:[%s3 + $0x8] sm:$0xff] %v91
  // Predicated region
  $region14: #{svector_forward.12} parent=0 // pred_check
    _
  $region15: #{svector_forward.12} parent=0 // pred_check_branch
    %95 = sbr.rel (0) target = $region17
  $region16: #{svector_forward.12} parent=0 // pred_region
    _
  $region17: #{svector_forward.12} parent=0 // pred_fallthru
    _
  // Predicated region
  $region18: #{svector_forward.12} parent=0 // pred_check
    _
  $region19: #{svector_forward.12} parent=0 // pred_check_branch
    %97 = sbr.rel (0) target = $region21
  $region20: #{svector_forward.12} parent=0 // pred_region
    _
  $region21: #{svector_forward.12} parent=0 // pred_fallthru
    _

// kernel: svector_forward.7
$region0: #{svector_forward.7}
  #allocation0 [shape = 'u32[]', space=smem, size = 0x4, offset = 0x4, fixed_abs, tag = 'smem constant byte address 0x4 - core index']
  #allocation1 [shape = 'u32[144,128]{1,0:T(1,128)}', space=vmem, size = 0x12000, scoped, tag = 'internal scratch']
  %s0 = inlined_call_operand.vmem [shape: f32[2,8,16], index: 0, kind: input, shape index: {}]
  %s1 = inlined_call_operand.vmem [shape: bf16[16,32], index: 1, kind: input, shape index: {}]
  %s2 = inlined_call_operand.vmem [shape: f32[1,32], index: 2, kind: input, shape index: {}]
  %s3 = inlined_call_operand.vmem [shape: f32[8,32], index: 3, kind: input, shape index: {}]
  %s4 = inlined_call_operand.vmem [shape: f32[2,8,32], index: 4, kind: output, shape index: {}]
  %s5 = sld [smem:[#allocation0]]
  $region49: #{svector_forward.7} parent=0
    _
  %s7 = ssub.s32 1, %s5
  %s8 = scalar_select 0, %s7, %s5
  loop: start=0, step=1, limit=4
  $region2: #{svector_forward.7} parent=0 // loop_pre_header
    _
  $region3: #{svector_forward.7} parent=0 // loop_header
    %s10 = sphi 0, %s14
    %p11 = scmp.ge.s32.totalorder %s10, 4
    %s17 = sphi 0, %s29
    %s18 = sphi 0, %s25
    %s19 = sphi 0, %s17
    %s20 = sphi 0, %s18
    %s21 = sphi 0, %s19
    %s22 = sphi 0, %s20
    %s34 = sphi 0, %s36
    %s37 = sphi 0, %s34
    %s38 = sphi 0, %s37
    %s54 = sphi 0, %s38
    %s58 = sphi 0, %s58
    %s60 = sphi 0, %s58
    %s61 = sphi 0, %s60
    %s75 = sphi 0, %s61
    %s79 = sphi 0, %s79
    %s81 = sphi 0, %s79
    %s82 = sphi 0, %s81
    %s96 = sphi 0, %s82
    %s102 = sphi 0, %s104
    %s105 = sphi 0, %s102
    %s106 = sphi 0, %s105
    %s122 = sphi 0, %s106
    %s130 = sphi 0, %s132
    %s133 = sphi 0, %s130
    %s134 = sphi 0, %s133
    %s150 = sphi 0, %s134
  $region4: #{svector_forward.7} parent=0 // loop_header_branch
    %13 = sbr.rel (%p11) target = $region8
  $region5: #{svector_forward.7} parent=0 // loop_body
    %s15 = ssub.s32 %s10, 1
    %s16 = ssub.s32 %s10, 2
    %s23 = sadd.s32 1, %s18
    %p24 = scmp.ge.s32.totalorder %s23, 1
    %s25 = scalar_select %p24, 0, %s23
    %s26 = sadd.s32 1, %s17
    %s27 = scalar_select %p24, %s26, %s17
    %p28 = scmp.ge.s32.totalorder %s27, 2
    %s29 = scalar_select %p28, 0, %s27
    %s30 = ssub.s32 %s17, %s29
    %s31 = ssub.s32 %s18, %s25
    %s32 = sor.u32 %s30, %s31
    %p33 = scmp.eq.s32.totalorder %s32, 0
    %s35 = sadd.s32 %s34, 1
    %s36 = scalar_select %p33, %s34, %s35
    %p39 = pneg %p33
    %p40 = scmp.eq.s32.totalorder %s10, 1
    %p41 = por %p39, %p40
    %p42 = scmp.ne.s32.totalorder %s34, %s37
    %p43 = scmp.eq.s32.totalorder %s10, 0
    %p44 = por %p42, %p43
    %p45 = scmp.ne.s32.totalorder %s34, %s37
    %p46 = scmp.eq.s32.totalorder %s15, 1
    %p47 = por %p45, %p46
    %p48 = scmp.ne.s32.totalorder %s37, %s38
    %p49 = scmp.eq.s32.totalorder %s15, 0
    %p50 = por %p48, %p49
    %p51 = scmp.ne.s32.totalorder %s37, %s38
    %p52 = scmp.eq.s32.totalorder %s16, 1
    %p53 = por %p51, %p52
    %p55 = scmp.ne.s32.totalorder %s38, %s54
    %p56 = scmp.eq.s32.totalorder %s16, 0
    %p57 = por %p55, %p56
    %s59 = sadd.s32 %s58, 1
    %p62 = scmp.eq.s32.totalorder %s10, 1
    %p63 = scmp.ne.s32.totalorder %s58, %s60
    %p64 = scmp.eq.s32.totalorder %s10, 0
    %p65 = por %p63, %p64
    %p66 = scmp.ne.s32.totalorder %s58, %s60
    %p67 = scmp.eq.s32.totalorder %s15, 1
    %p68 = por %p66, %p67
    %p69 = scmp.ne.s32.totalorder %s60, %s61
    %p70 = scmp.eq.s32.totalorder %s15, 0
    %p71 = por %p69, %p70
    %p72 = scmp.ne.s32.totalorder %s60, %s61
    %p73 = scmp.eq.s32.totalorder %s16, 1
    %p74 = por %p72, %p73
    %p76 = scmp.ne.s32.totalorder %s61, %s75
    %p77 = scmp.eq.s32.totalorder %s16, 0
    %p78 = por %p76, %p77
    %s80 = sadd.s32 %s79, 1
    %p83 = scmp.eq.s32.totalorder %s10, 1
    %p84 = scmp.ne.s32.totalorder %s79, %s81
    %p85 = scmp.eq.s32.totalorder %s10, 0
    %p86 = por %p84, %p85
    %p87 = scmp.ne.s32.totalorder %s79, %s81
    %p88 = scmp.eq.s32.totalorder %s15, 1
    %p89 = por %p87, %p88
    %p90 = scmp.ne.s32.totalorder %s81, %s82
    %p91 = scmp.eq.s32.totalorder %s15, 0
    %p92 = por %p90, %p91
    %p93 = scmp.ne.s32.totalorder %s81, %s82
    %p94 = scmp.eq.s32.totalorder %s16, 1
    %p95 = por %p93, %p94
    %p97 = scmp.ne.s32.totalorder %s82, %s96
    %p98 = scmp.eq.s32.totalorder %s16, 0
    %p99 = por %p97, %p98
    %s100 = ssub.s32 %s18, %s25
    %p101 = scmp.eq.s32.totalorder %s100, 0
    %s103 = sadd.s32 %s102, 1
    %s104 = scalar_select %p101, %s102, %s103
    %p107 = pneg %p101
    %p108 = scmp.eq.s32.totalorder %s10, 1
    %p109 = por %p107, %p108
    %p110 = scmp.ne.s32.totalorder %s102, %s105
    %p111 = scmp.eq.s32.totalorder %s10, 0
    %p112 = por %p110, %p111
    %p113 = scmp.ne.s32.totalorder %s102, %s105
    %p114 = scmp.eq.s32.totalorder %s15, 1
    %p115 = por %p113, %p114
    %p116 = scmp.ne.s32.totalorder %s105, %s106
    %p117 = scmp.eq.s32.totalorder %s15, 0
    %p118 = por %p116, %p117
    %p119 = scmp.ne.s32.totalorder %s105, %s106
    %p120 = scmp.eq.s32.totalorder %s16, 1
    %p121 = por %p119, %p120
    %p123 = scmp.ne.s32.totalorder %s106, %s122
    %p124 = scmp.eq.s32.totalorder %s16, 0
    %p125 = por %p123, %p124
    %s126 = ssub.s32 %s17, %s29
    %s127 = ssub.s32 %s18, %s25
    %s128 = sor.u32 %s126, %s127
    %p129 = scmp.eq.s32.totalorder %s128, 0
    %s131 = sadd.s32 %s130, 1
    %s132 = scalar_select %p129, %s130, %s131
    %p135 = pneg %p129
    %p136 = scmp.eq.s32.totalorder %s10, 1
    %p137 = por %p135, %p136
    %p138 = scmp.ne.s32.totalorder %s130, %s133
    %p139 = scmp.eq.s32.totalorder %s10, 0
    %p140 = por %p138, %p139
    %p141 = scmp.ne.s32.totalorder %s130, %s133
    %p142 = scmp.eq.s32.totalorder %s15, 1
    %p143 = por %p141, %p142
    %p144 = scmp.ne.s32.totalorder %s133, %s134
    %p145 = scmp.eq.s32.totalorder %s15, 0
    %p146 = por %p144, %p145
    %p147 = scmp.ne.s32.totalorder %s133, %s134
    %p148 = scmp.eq.s32.totalorder %s16, 1
    %p149 = por %p147, %p148
    %p151 = scmp.ne.s32.totalorder %s134, %s150
    %p152 = scmp.eq.s32.totalorder %s16, 0
    %p153 = por %p151, %p152
    %p154 = scmp.le.s32.totalorder 1, %s10
    %p155 = scmp.lt.s32.totalorder %s10, 3
    %p156 = pnand %p154, %p155
    %p157 = pneg %p156
    // Predicated region
    $region9: #{svector_forward.7} parent=5 // pred_check
      _
    $region10: #{svector_forward.7} parent=5 // pred_check_branch
      %159 = sbr.rel (%p156) target = $region12
    $region11: #{svector_forward.7} parent=5 // pred_region
      %s160 = ssub.s32 %s10, 1
      // Predicated region
      $region13: #{svector_forward.7} parent=11 // pred_check
        %p161 = pneg %p71
      $region14: #{svector_forward.7} parent=11 // pred_check_branch
        %163 = sbr.rel (%p161) target = $region16
      $region15: #{svector_forward.7} parent=11 // pred_region
        _
      $region16: #{svector_forward.7} parent=11 // pred_fallthru
        _
      // Predicated region
      $region17: #{svector_forward.7} parent=11 // pred_check
        %p164 = pneg %p92
      $region18: #{svector_forward.7} parent=11 // pred_check_branch
        %166 = sbr.rel (%p164) target = $region20
      $region19: #{svector_forward.7} parent=11 // pred_region
        _
      $region20: #{svector_forward.7} parent=11 // pred_fallthru
        _
      // Predicated region
      $region21: #{svector_forward.7} parent=11 // pred_check
        %p167 = pneg %p118
      $region22: #{svector_forward.7} parent=11 // pred_check_branch
        %169 = sbr.rel (%p167) target = $region24
      $region23: #{svector_forward.7} parent=11 // pred_region
        %p170 = scmp.lt.s32.totalorder %s20, 0
        %s171 = scalar_select %p170, %s20, 0
        %s172 = smul.addr %s171, 8
        %s173 = scalar_lea.vmem %s3, %s172
      $region24: #{svector_forward.7} parent=11 // pred_fallthru
        _
    $region12: #{svector_forward.7} parent=5 // pred_fallthru
      _
    %p174 = scmp.lt.s32.totalorder %s10, 2
    // Predicated region
    $region25: #{svector_forward.7} parent=5 // pred_check
      %p175 = pneg %p174
    $region26: #{svector_forward.7} parent=5 // pred_check_branch
      %177 = sbr.rel (%p175) target = $region28
    $region27: #{svector_forward.7} parent=5 // pred_region
      // Predicated region
      $region29: #{svector_forward.7} parent=27 // pred_check
        %p178 = pneg %p44
      $region30: #{svector_forward.7} parent=27 // pred_check_branch
        %180 = sbr.rel (%p178) target = $region32
      $region31: #{svector_forward.7} parent=27 // pred_region
        %p181 = scmp.lt.s32.totalorder %s17, 1
        %s182 = scalar_select %p181, %s17, 1
        %p183 = scmp.lt.s32.totalorder %s18, 0
        %s184 = scalar_select %p183, %s18, 0
        %s185 = sadd.s32 %s184, %s182
        %s186 = smul.addr %s185, 8
        %s187 = scalar_lea.vmem %s0, %s186
      $region32: #{svector_forward.7} parent=27 // pred_fallthru
        _
    $region28: #{svector_forward.7} parent=5 // pred_fallthru
      _
    %p188 = scmp.le.s32.totalorder 1, %s10
    %p189 = scmp.lt.s32.totalorder %s10, 3
    %p190 = pnand %p188, %p189
    %p191 = pneg %p190
    // Predicated region
    $region33: #{svector_forward.7} parent=5 // pred_check
      _
    $region34: #{svector_forward.7} parent=5 // pred_check_branch
      %193 = sbr.rel (%p190) target = $region36
    $region35: #{svector_forward.7} parent=5 // pred_region
      %s194 = ssub.s32 %s10, 1
      %p195 = scmp.lt.s32.totalorder %s19, 1
      %s196 = scalar_select %p195, %s19, 1
      %p197 = scmp.lt.s32.totalorder %s20, 0
      %s198 = scalar_select %p197, %s20, 0
      %s199 = sadd.s32 %s198, %s196
      %s200 = smul.addr %s199, 8
      %s201 = scalar_lea.vmem %s0, %s200
      %p202 = pneg %p50
      %p203 = pneg %p47
      %p204 = pneg %p71
      %p205 = pneg %p68
      %p206 = pneg %p92
      %p207 = pneg %p89
      %p208 = scmp.lt.s32.totalorder %s20, 0
      %s209 = scalar_select %p208, %s20, 0
      %s210 = smul.addr %s209, 8
      %s211 = scalar_lea.vmem %s3, %s210
      %p212 = pneg %p118
      %p213 = pneg %p115
      %p214 = pneg %p146
      %p215 = pneg %p143
      %p216 = scmp.lt.s32.totalorder %s19, 1
      %s217 = scalar_select %p216, %s19, 1
      %p218 = scmp.lt.s32.totalorder %s20, 0
      %s219 = scalar_select %p218, %s20, 0
      %s220 = sadd.s32 %s219, %s217
      %s221 = smul.addr %s220, 8
      %s222 = scalar_lea.vmem %s4, %s221
      %p223 = scmp.lt.s32.totalorder %s19, 1
      %s224 = scalar_select %p223, %s19, 1
      %p225 = scmp.lt.s32.totalorder %s20, 0
      %s226 = scalar_select %p225, %s20, 0
      %s227 = sadd.s32 %s226, %s224
      %s228 = smul.addr %s227, 8
      %s229 = scalar_lea.vmem %s0, %s228
      %p230 = scmp.lt.s32.totalorder %s20, 0
      %s231 = scalar_select %p230, %s20, 0
      %s232 = smul.addr %s231, 8
      %s233 = scalar_lea.vmem %s3, %s232
      %p234 = scmp.lt.s32.totalorder %s19, 1
      %s235 = scalar_select %p234, %s19, 1
      %p236 = scmp.lt.s32.totalorder %s20, 0
      %s237 = scalar_select %p236, %s20, 0
      %s238 = sadd.s32 %s237, %s235
      %s239 = smul.addr %s238, 8
      %s240 = scalar_lea.vmem %s4, %s239
      %v242 = vld [vmem:[%s229] sm:$0xff]
      %v243 = vpack.c.bf16 %v242, %v242
      %v244 = vld [vmem:[%s1] sm:$0xf]
      %v245 = vld [vmem:[%s1 + $0x4] sm:$0xf]
      %v246 = vld [vmem:[%s2] sm:$0x1]
      %v248 = vlaneseq
      %v249 = vshrl.u32 %v248, 7
      %v250 = vsub.s32 0, %v249
      %v251 = vrot.slane %v246, %v250
      %v255 = vunpack.c.l.b16 %v244
      %v256 = vunpack.c.l.b16 %v245
      %v257 = vpack.c.b16 %v256, %v255
      %vm259 = vcmask 130048
      %v261 = vsel %vm259, %v243, 0
      %263 = vmatprep.subr.bf16.mxu0 0
      %264 = vmatpush1.bf16.msra.mxu0 0
      %265 = vmatprep.subr.bf16.mxu0 0
      %266 = vmatpush1.bf16.msra.mxu0 0
      %267 = vmatprep.subr.bf16.mxu0 0
      %268 = vmatpush1.bf16.msra.mxu0 0
      %269 = vmatprep.subr.bf16.mxu0 0
      %270 = vmatpush1.bf16.msra.mxu0 0
      %271 = vmatprep.subr.bf16.mxu0 0
      %272 = vmatpush1.bf16.msra.mxu0 0
      %273 = vmatprep.subr.bf16.mxu0 0
      %274 = vmatpush1.bf16.msra.mxu0 0
      %275 = vmatprep.subr.bf16.mxu0 0
      %276 = vmatpush1.bf16.msra.mxu0 0
      %277 = vmatprep.subr.bf16.mxu0 0
      %278 = vmatpush1.bf16.msra.mxu0 %v257
      %279 = vmatprep.subr.bf16.mxu0 0
      %280 = vmatpush2.bf16.msra.mxu0 0
      %281 = vmatprep.subr.bf16.mxu0 0
      %282 = vmatpush2.bf16.msra.mxu0 0
      %283 = vmatprep.subr.bf16.mxu0 0
      %284 = vmatpush2.bf16.msra.mxu0 0
      %285 = vmatprep.subr.bf16.mxu0 0
      %286 = vmatpush2.bf16.msra.mxu0 0
      %287 = vmatprep.subr.bf16.mxu0 0
      %288 = vmatpush2.bf16.msra.mxu0 0
      %289 = vmatprep.subr.bf16.mxu0 0
      %290 = vmatpush2.bf16.msra.mxu0 0
      %291 = vmatprep.subr.bf16.mxu0 0
      %292 = vmatpush2.bf16.msra.mxu0 0
      %293 = vmatprep.subr.bf16.mxu0 0
      %294 = vmatpush2.bf16.msra.mxu0 0
      %295 = vmatprep.mubr.bf16.mxu0 0
      %296 = vmatmul.mubr.bf16.gmra.mxu0 %v261
      %v297 = vpop.f32.mrf.mxu0
      %v298 = vadd.f32 %v251, %v297
      %v299 = vpop.f32.mrf.mxu0
      %v300 = vpop.f32.mrf.mxu0
      %v301 = vpop.f32.mrf.mxu0
      %302 = vdwg.mxu0
      %v303 = vmax.f32 %v298, 0.0
      %v304 = vld [vmem:[%s233] sm:$0xff]
      %v305 = vadd.f32 %v303, %v304
      %vm306 = vcmask 261120
      %307 = vst.msk [vmem:[%s240] sm:$0xff] %vm306, %v305
      %p308 = scmp.lt.s32.totalorder %s19, 1
      %s309 = scalar_select %p308, %s19, 1
      %p310 = scmp.lt.s32.totalorder %s20, 0
      %s311 = scalar_select %p310, %s20, 0
      %s312 = sadd.s32 %s311, %s309
      %s313 = smul.addr %s312, 8
      %s314 = scalar_lea.vmem %s4, %s313
      // Predicated region
      $region37: #{svector_forward.7} parent=35 // pred_check
        %p315 = pneg %p143
      $region38: #{svector_forward.7} parent=35 // pred_check_branch
        %317 = sbr.rel (%p315) target = $region40
      $region39: #{svector_forward.7} parent=35 // pred_region
        _
      $region40: #{svector_forward.7} parent=35 // pred_fallthru
        _
    $region36: #{svector_forward.7} parent=5 // pred_fallthru
      _
    %p318 = scmp.le.s32.totalorder 2, %s10
    // Predicated region
    $region41: #{svector_forward.7} parent=5 // pred_check
      %p319 = pneg %p318
    $region42: #{svector_forward.7} parent=5 // pred_check_branch
      %321 = sbr.rel (%p319) target = $region44
    $region43: #{svector_forward.7} parent=5 // pred_region
      %s322 = ssub.s32 %s10, 2
      // Predicated region
      $region45: #{svector_forward.7} parent=43 // pred_check
        %p323 = pneg %p149
      $region46: #{svector_forward.7} parent=43 // pred_check_branch
        %325 = sbr.rel (%p323) target = $region48
      $region47: #{svector_forward.7} parent=43 // pred_region
        %p326 = scmp.lt.s32.totalorder %s21, 1
        %s327 = scalar_select %p326, %s21, 1
        %p328 = scmp.lt.s32.totalorder %s22, 0
        %s329 = scalar_select %p328, %s22, 0
        %s330 = sadd.s32 %s329, %s327
        %s331 = smul.addr %s330, 8
        %s332 = scalar_lea.vmem %s4, %s331
      $region48: #{svector_forward.7} parent=43 // pred_fallthru
        _
    $region44: #{svector_forward.7} parent=5 // pred_fallthru
      _
  $region6: #{svector_forward.7} parent=0 // loop_footer
    %s14 = sadd.s32 1, %s10
  $region7: #{svector_forward.7} parent=0 // loop_footer_branch
    %9 = sbr.rel target = $region3
  $region8: #{svector_forward.7} parent=0 // loop_exit
    _

// kernel: svector_forward.9
$region0: #{svector_forward.9}
  #allocation0 [shape = 'u32[]', space=smem, size = 0x4, offset = 0x4, fixed_abs, tag = 'smem constant byte address 0x4 - core index']
  #allocation1 [shape = 'u32[144,128]{1,0:T(1,128)}', space=vmem, size = 0x12000, scoped, tag = 'internal scratch']
  %s0 = inlined_call_operand.vmem [shape: f32[16,32], index: 0, kind: input, shape index: {}]
  %s1 = inlined_call_operand.vmem [shape: bf16[32,64], index: 1, kind: input, shape index: {}]
  %s2 = inlined_call_operand.vmem [shape: f32[1,64], index: 2, kind: input, shape index: {}]
  %s3 = inlined_call_operand.vmem [shape: bf16[64,32], index: 3, kind: input, shape index: {}]
  %s4 = inlined_call_operand.vmem [shape: f32[1,32], index: 4, kind: input, shape index: {}]
  %s5 = inlined_call_operand.vmem [shape: f32[1,32], index: 5, kind: input, shape index: {}]
  %s6 = inlined_call_operand.vmem [shape: f32[1,32], index: 6, kind: input, shape index: {}]
  %s7 = inlined_call_operand.vmem [shape: f32[16,32], index: 7, kind: output, shape index: {}]
  %s8 = sld [smem:[#allocation0]]
  $region38: #{svector_forward.9} parent=0
    _
  %s10 = ssub.s32 1, %s8
  %s11 = scalar_select 0, %s10, %s8
  // Predicated region
  $region2: #{svector_forward.9} parent=0 // pred_check
    _
  $region3: #{svector_forward.9} parent=0 // pred_check_branch
    %13 = sbr.rel (0) target = $region5
  $region4: #{svector_forward.9} parent=0 // pred_region
    _
  $region5: #{svector_forward.9} parent=0 // pred_fallthru
    _
  // Predicated region
  $region6: #{svector_forward.9} parent=0 // pred_check
    _
  $region7: #{svector_forward.9} parent=0 // pred_check_branch
    %15 = sbr.rel (0) target = $region9
  $region8: #{svector_forward.9} parent=0 // pred_region
    _
  $region9: #{svector_forward.9} parent=0 // pred_fallthru
    _
  // Predicated region
  $region10: #{svector_forward.9} parent=0 // pred_check
    _
  $region11: #{svector_forward.9} parent=0 // pred_check_branch
    %17 = sbr.rel (0) target = $region13
  $region12: #{svector_forward.9} parent=0 // pred_region
    _
  $region13: #{svector_forward.9} parent=0 // pred_fallthru
    _
  // Predicated region
  $region14: #{svector_forward.9} parent=0 // pred_check
    _
  $region15: #{svector_forward.9} parent=0 // pred_check_branch
    %19 = sbr.rel (0) target = $region17
  $region16: #{svector_forward.9} parent=0 // pred_region
    _
  $region17: #{svector_forward.9} parent=0 // pred_fallthru
    _
  // Predicated region
  $region18: #{svector_forward.9} parent=0 // pred_check
    _
  $region19: #{svector_forward.9} parent=0 // pred_check_branch
    %21 = sbr.rel (0) target = $region21
  $region20: #{svector_forward.9} parent=0 // pred_region
    _
  $region21: #{svector_forward.9} parent=0 // pred_fallthru
    _
  // Predicated region
  $region22: #{svector_forward.9} parent=0 // pred_check
    _
  $region23: #{svector_forward.9} parent=0 // pred_check_branch
    %23 = sbr.rel (0) target = $region25
  $region24: #{svector_forward.9} parent=0 // pred_region
    _
  $region25: #{svector_forward.9} parent=0 // pred_fallthru
    _
  // Predicated region
  $region26: #{svector_forward.9} parent=0 // pred_check
    _
  $region27: #{svector_forward.9} parent=0 // pred_check_branch
    %25 = sbr.rel (0) target = $region29
  $region28: #{svector_forward.9} parent=0 // pred_region
    _
  $region29: #{svector_forward.9} parent=0 // pred_fallthru
    _
  %v27 = vld [vmem:[%s0] sm:$0xff]
  %v28 = vld [vmem:[%s0 + $0x8] sm:$0xff]
  %v29 = vpack.c.bf16 %v28, %v27
  %v30 = vld [vmem:[%s1] sm:$0xf]
  %v31 = vld [vmem:[%s1 + $0x4] sm:$0xf]
  %v32 = vld [vmem:[%s1 + $0x8] sm:$0xf]
  %v33 = vld [vmem:[%s1 + $0xc] sm:$0xf]
  %v34 = vld [vmem:[%s2] sm:$0x1]
  %v36 = vlaneseq
  %v37 = vshrl.u32 %v36, 7
  %v38 = vsub.s32 0, %v37
  %v39 = vrot.slane %v34, %v38
  %v45 = vunpack.c.l.b16 %v30
  %v46 = vunpack.c.l.b16 %v31
  %v47 = vunpack.c.l.b16 %v32
  %v48 = vunpack.c.l.b16 %v33
  %v49 = vpack.c.b16 %v46, %v45
  %v50 = vpack.c.b16 %v48, %v47
  %vm53 = vcmask 261120
  %v55 = vsel %vm53, %v29, 0
  %57 = vmatprep.subr.bf16.mxu0 0
  %58 = vmatpush1.bf16.msra.mxu0 0
  %59 = vmatprep.subr.bf16.mxu0 0
  %60 = vmatpush1.bf16.msra.mxu0 0
  %61 = vmatprep.subr.bf16.mxu0 0
  %62 = vmatpush1.bf16.msra.mxu0 0
  %63 = vmatprep.subr.bf16.mxu0 0
  %64 = vmatpush1.bf16.msra.mxu0 0
  %65 = vmatprep.subr.bf16.mxu0 0
  %66 = vmatpush1.bf16.msra.mxu0 0
  %67 = vmatprep.subr.bf16.mxu0 0
  %68 = vmatpush1.bf16.msra.mxu0 0
  %69 = vmatprep.subr.bf16.mxu0 0
  %70 = vmatpush1.bf16.msra.mxu0 %v50
  %71 = vmatprep.subr.bf16.mxu0 0
  %72 = vmatpush1.bf16.msra.mxu0 %v49
  %73 = vmatprep.subr.bf16.mxu0 0
  %74 = vmatpush2.bf16.msra.mxu0 0
  %75 = vmatprep.subr.bf16.mxu0 0
  %76 = vmatpush2.bf16.msra.mxu0 0
  %77 = vmatprep.subr.bf16.mxu0 0
  %78 = vmatpush2.bf16.msra.mxu0 0
  %79 = vmatprep.subr.bf16.mxu0 0
  %80 = vmatpush2.bf16.msra.mxu0 0
  %81 = vmatprep.subr.bf16.mxu0 0
  %82 = vmatpush2.bf16.msra.mxu0 0
  %83 = vmatprep.subr.bf16.mxu0 0
  %84 = vmatpush2.bf16.msra.mxu0 0
  %85 = vmatprep.subr.bf16.mxu0 0
  %86 = vmatpush2.bf16.msra.mxu0 0
  %87 = vmatprep.subr.bf16.mxu0 0
  %88 = vmatpush2.bf16.msra.mxu0 0
  %89 = vmatprep.mubr.bf16.mxu0 0
  %90 = vmatmul.mubr.bf16.gmra.mxu0 %v55
  %v91 = vpop.f32.mrf.mxu0
  %v92 = vadd.f32 %v39, %v91
  %v93 = vpop.f32.mrf.mxu0
  %v94 = vpop.f32.mrf.mxu0
  %v95 = vadd.f32 %v39, %v94
  %v96 = vpop.f32.mrf.mxu0
  %97 = vdwg.mxu0
  %v98 = vmax.f32 %v92, 0.0
  %v99 = vmax.f32 %v95, 0.0
  %v100 = vpack.c.bf16 %v99, %v98
  %v101 = vld [vmem:[%s3] sm:$0xf]
  %v102 = vld [vmem:[%s3 + $0x4] sm:$0xf]
  %v103 = vld [vmem:[%s3 + $0x8] sm:$0xf]
  %v104 = vld [vmem:[%s3 + $0xc] sm:$0xf]
  %v105 = vld [vmem:[%s3 + $0x10] sm:$0xf]
  %v106 = vld [vmem:[%s3 + $0x14] sm:$0xf]
  %v107 = vld [vmem:[%s3 + $0x18] sm:$0xf]
  %v108 = vld [vmem:[%s3 + $0x1c] sm:$0xf]
  %v109 = vld [vmem:[%s4] sm:$0x1]
  %v111 = vlaneseq
  %v112 = vshrl.u32 %v111, 7
  %v113 = vsub.s32 0, %v112
  %v114 = vrot.slane %v109, %v113
  %v124 = vunpack.c.l.b16 %v101
  %v125 = vunpack.c.l.b16 %v102
  %v126 = vunpack.c.l.b16 %v103
  %v127 = vunpack.c.l.b16 %v104
  %v128 = vunpack.c.l.b16 %v105
  %v129 = vunpack.c.l.b16 %v106
  %v130 = vunpack.c.l.b16 %v107
  %v131 = vunpack.c.l.b16 %v108
  %v132 = vpack.c.b16 %v125, %v124
  %v133 = vpack.c.b16 %v127, %v126
  %v134 = vpack.c.b16 %v129, %v128
  %v135 = vpack.c.b16 %v131, %v130
  %vm140 = vcmask 523264
  %v142 = vsel %vm140, %v100, 0
  %144 = vmatprep.subr.bf16.mxu0 0
  %145 = vmatpush1.bf16.msra.mxu0 0
  %146 = vmatprep.subr.bf16.mxu0 0
  %147 = vmatpush1.bf16.msra.mxu0 0
  %148 = vmatprep.subr.bf16.mxu0 0
  %149 = vmatpush1.bf16.msra.mxu0 0
  %150 = vmatprep.subr.bf16.mxu0 0
  %151 = vmatpush1.bf16.msra.mxu0 0
  %152 = vmatprep.subr.bf16.mxu0 0
  %153 = vmatpush1.bf16.msra.mxu0 %v135
  %154 = vmatprep.subr.bf16.mxu0 0
  %155 = vmatpush1.bf16.msra.mxu0 %v134
  %156 = vmatprep.subr.bf16.mxu0 0
  %157 = vmatpush1.bf16.msra.mxu0 %v133
  %158 = vmatprep.subr.bf16.mxu0 0
  %159 = vmatpush1.bf16.msra.mxu0 %v132
  %160 = vmatprep.subr.bf16.mxu0 0
  %161 = vmatpush2.bf16.msra.mxu0 0
  %162 = vmatprep.subr.bf16.mxu0 0
  %163 = vmatpush2.bf16.msra.mxu0 0
  %164 = vmatprep.subr.bf16.mxu0 0
  %165 = vmatpush2.bf16.msra.mxu0 0
  %166 = vmatprep.subr.bf16.mxu0 0
  %167 = vmatpush2.bf16.msra.mxu0 0
  %168 = vmatprep.subr.bf16.mxu0 0
  %169 = vmatpush2.bf16.msra.mxu0 0
  %170 = vmatprep.subr.bf16.mxu0 0
  %171 = vmatpush2.bf16.msra.mxu0 0
  %172 = vmatprep.subr.bf16.mxu0 0
  %173 = vmatpush2.bf16.msra.mxu0 0
  %174 = vmatprep.subr.bf16.mxu0 0
  %175 = vmatpush2.bf16.msra.mxu0 0
  %176 = vmatprep.mubr.bf16.mxu0 0
  %177 = vmatmul.mubr.bf16.gmra.mxu0 %v142
  %v178 = vpop.f32.mrf.mxu0
  %v179 = vadd.f32 %v114, %v178
  %v180 = vpop.f32.mrf.mxu0
  %v181 = vpop.f32.mrf.mxu0
  %v182 = vadd.f32 %v114, %v181
  %v183 = vpop.f32.mrf.mxu0
  %184 = vdwg.mxu0
  %v185 = vadd.f32 %v179, %v27
  %v186 = vadd.f32 %v182, %v28
  %v187 = vsel %vm53, %v185, 0.0
  %188 = vadd.xlane.f32.xlu0 %v187
  %v189 = vpop.xlane.xlu0 %188
  %v190 = vsel %vm53, %v186, 0.0
  %191 = vadd.xlane.f32.xlu0 %v190
  %v192 = vpop.xlane.xlu0 %191
  %v193 = vrcp.pop 32.0
  %v194 = vmul.f32 %v189, %v193
  %v195 = vmul.f32 %v192, %v193
  %v196 = vsub.f32 %v185, %v194
  %v197 = vsub.f32 %v186, %v195
  %v198 = vmul.f32 %v196, %v196
  %v199 = vmul.f32 %v197, %v197
  %v200 = vsel %vm53, %v198, 0.0
  %201 = vadd.xlane.f32.xlu0 %v200
  %v202 = vpop.xlane.xlu0 %201
  %v203 = vsel %vm53, %v199, 0.0
  %204 = vadd.xlane.f32.xlu0 %v203
  %v205 = vpop.xlane.xlu0 %204
  %v206 = vmul.f32 %v202, %v193
  %v207 = vmul.f32 %v205, %v193
  %v208 = vadd.f32 %v206, 1e-05
  %v209 = vadd.f32 %v207, 1e-05
  %v210 = vrsqrt.pop %v208
  %v211 = vrsqrt.pop %v209
  %v212 = vmul.f32 %v196, %v210
  %v213 = vmul.f32 %v197, %v211
  %v214 = vld [vmem:[%s5] sm:$0x1]
  %v216 = vlaneseq
  %v217 = vshrl.u32 %v216, 7
  %v218 = vsub.s32 0, %v217
  %v219 = vrot.slane %v214, %v218
  %v221 = vmul.f32 %v212, %v219
  %v222 = vmul.f32 %v213, %v219
  %v223 = vld [vmem:[%s6] sm:$0x1]
  %v225 = vlaneseq
  %v226 = vshrl.u32 %v225, 7
  %v227 = vsub.s32 0, %v226
  %v228 = vrot.slane %v223, %v227
  %v230 = vadd.f32 %v221, %v228
  %v231 = vadd.f32 %v222, %v228
  %232 = vst.msk [vmem:[%s7] sm:$0xff] %vm53, %v230
  %233 = vst.msk [vmem:[%s7 + $0x8] sm:$0xff] %vm53, %v231
  // Predicated region
  $region30: #{svector_forward.9} parent=0 // pred_check
    _
  $region31: #{svector_forward.9} parent=0 // pred_check_branch
    %235 = sbr.rel (0) target = $region33
  $region32: #{svector_forward.9} parent=0 // pred_region
    _
  $region33: #{svector_forward.9} parent=0 // pred_fallthru
    _
  // Predicated region
  $region34: #{svector_forward.9} parent=0 // pred_check
    _
  $region35: #{svector_forward.9} parent=0 // pred_check_branch
    %237 = sbr.rel (0) target = $region37
  $region36: #{svector_forward.9} parent=0 // pred_region
    _
  $region37: #{svector_forward.9} parent=0 // pred_fallthru
    _

// kernel: svector_forward.8
$region0: #{svector_forward.8}
  #allocation0 [shape = 'u32[]', space=smem, size = 0x4, offset = 0x4, fixed_abs, tag = 'smem constant byte address 0x4 - core index']
  #allocation1 [shape = 'u32[144,128]{1,0:T(1,128)}', space=vmem, size = 0x12000, scoped, tag = 'internal scratch']
  #allocation2 [shape = 'f32[8,32]{1,0:T(8,128)}', space=vmem, size = 0x1000, scoped, tag = 'scratch operand']
  %s0 = inlined_call_operand.vmem [shape: f32[2,8,32], index: 0, kind: input, shape index: {}]
  %s1 = inlined_call_operand.vmem [shape: bf16[4,32,8], index: 1, kind: input, shape index: {}]
  %s2 = inlined_call_operand.vmem [shape: bf16[4,32,8], index: 2, kind: input, shape index: {}]
  %s3 = inlined_call_operand.vmem [shape: bf16[4,32,8], index: 3, kind: input, shape index: {}]
  %s4 = inlined_call_operand.vmem [shape: f32[4,1,8], index: 4, kind: input, shape index: {}]
  %s5 = inlined_call_operand.vmem [shape: f32[4,1,8], index: 5, kind: input, shape index: {}]
  %s6 = inlined_call_operand.vmem [shape: f32[4,1,8], index: 6, kind: input, shape index: {}]
  %s7 = inlined_call_operand.vmem [shape: bf16[4,8,32], index: 7, kind: input, shape index: {}]
  %s8 = inlined_call_operand.vmem [shape: f32[1,32], index: 8, kind: input, shape index: {}]
  %s9 = inlined_call_operand.vmem [shape: f32[1,32], index: 9, kind: input, shape index: {}]
  %s10 = inlined_call_operand.vmem [shape: f32[1,32], index: 10, kind: input, shape index: {}]
  %s11 = inlined_call_operand.vmem [shape: f32[2,8,32], index: 11, kind: output, shape index: {}]
  %s12 = sld [smem:[#allocation0]]
  $region85: #{svector_forward.8} parent=0
    _
  %s14 = ssub.s32 1, %s12
  %s15 = scalar_select 0, %s14, %s12
  loop: start=0, step=1, limit=10
  $region2: #{svector_forward.8} parent=0 // loop_pre_header
    _
  $region3: #{svector_forward.8} parent=0 // loop_header
    %s17 = sphi 0, %s21
    %p18 = scmp.ge.s32.totalorder %s17, 10
    %s24 = sphi 0, %s36
    %s25 = sphi 0, %s32
    %s26 = sphi 0, %s24
    %s27 = sphi 0, %s25
    %s28 = sphi 0, %s26
    %s29 = sphi 0, %s27
    %s39 = sphi 0, %s41
    %s42 = sphi 0, %s39
    %s43 = sphi 0, %s42
    %s59 = sphi 0, %s43
    %s65 = sphi 0, %s67
    %s68 = sphi 0, %s65
    %s69 = sphi 0, %s68
    %s85 = sphi 0, %s69
    %s91 = sphi 0, %s93
    %s94 = sphi 0, %s91
    %s95 = sphi 0, %s94
    %s111 = sphi 0, %s95
    %s117 = sphi 0, %s119
    %s120 = sphi 0, %s117
    %s121 = sphi 0, %s120
    %s137 = sphi 0, %s121
    %s143 = sphi 0, %s145
    %s146 = sphi 0, %s143
    %s147 = sphi 0, %s146
    %s163 = sphi 0, %s147
    %s169 = sphi 0, %s171
    %s172 = sphi 0, %s169
    %s173 = sphi 0, %s172
    %s189 = sphi 0, %s173
    %s195 = sphi 0, %s197
    %s198 = sphi 0, %s195
    %s199 = sphi 0, %s198
    %s215 = sphi 0, %s199
    %s221 = sphi 0, %s223
    %s224 = sphi 0, %s221
    %s225 = sphi 0, %s224
    %s241 = sphi 0, %s225
    %s245 = sphi 0, %s245
    %s247 = sphi 0, %s245
    %s248 = sphi 0, %s247
    %s262 = sphi 0, %s248
    %s266 = sphi 0, %s266
    %s268 = sphi 0, %s266
    %s269 = sphi 0, %s268
    %s283 = sphi 0, %s269
    %s287 = sphi 0, %s287
    %s289 = sphi 0, %s287
    %s290 = sphi 0, %s289
    %s304 = sphi 0, %s290
    %s310 = sphi 0, %s312
    %s313 = sphi 0, %s310
    %s314 = sphi 0, %s313
    %s330 = sphi 0, %s314
  $region4: #{svector_forward.8} parent=0 // loop_header_branch
    %20 = sbr.rel (%p18) target = $region8
  $region5: #{svector_forward.8} parent=0 // loop_body
    %s22 = ssub.s32 %s17, 1
    %s23 = ssub.s32 %s17, 2
    %s30 = sadd.s32 1, %s25
    %p31 = scmp.ge.s32.totalorder %s30, 4
    %s32 = scalar_select %p31, 0, %s30
    %s33 = sadd.s32 1, %s24
    %s34 = scalar_select %p31, %s33, %s24
    %p35 = scmp.ge.s32.totalorder %s34, 2
    %s36 = scalar_select %p35, 0, %s34
    %s37 = ssub.s32 %s24, %s36
    %p38 = scmp.eq.s32.totalorder %s37, 0
    %s40 = sadd.s32 %s39, 1
    %s41 = scalar_select %p38, %s39, %s40
    %p44 = pneg %p38
    %p45 = scmp.eq.s32.totalorder %s17, 7
    %p46 = por %p44, %p45
    %p47 = scmp.ne.s32.totalorder %s39, %s42
    %p48 = scmp.eq.s32.totalorder %s17, 0
    %p49 = por %p47, %p48
    %p50 = scmp.ne.s32.totalorder %s39, %s42
    %p51 = scmp.eq.s32.totalorder %s22, 7
    %p52 = por %p50, %p51
    %p53 = scmp.ne.s32.totalorder %s42, %s43
    %p54 = scmp.eq.s32.totalorder %s22, 0
    %p55 = por %p53, %p54
    %p56 = scmp.ne.s32.totalorder %s42, %s43
    %p57 = scmp.eq.s32.totalorder %s23, 7
    %p58 = por %p56, %p57
    %p60 = scmp.ne.s32.totalorder %s43, %s59
    %p61 = scmp.eq.s32.totalorder %s23, 0
    %p62 = por %p60, %p61
    %s63 = ssub.s32 %s25, %s32
    %p64 = scmp.eq.s32.totalorder %s63, 0
    %s66 = sadd.s32 %s65, 1
    %s67 = scalar_select %p64, %s65, %s66
    %p70 = pneg %p64
    %p71 = scmp.eq.s32.totalorder %s17, 7
    %p72 = por %p70, %p71
    %p73 = scmp.ne.s32.totalorder %s65, %s68
    %p74 = scmp.eq.s32.totalorder %s17, 0
    %p75 = por %p73, %p74
    %p76 = scmp.ne.s32.totalorder %s65, %s68
    %p77 = scmp.eq.s32.totalorder %s22, 7
    %p78 = por %p76, %p77
    %p79 = scmp.ne.s32.totalorder %s68, %s69
    %p80 = scmp.eq.s32.totalorder %s22, 0
    %p81 = por %p79, %p80
    %p82 = scmp.ne.s32.totalorder %s68, %s69
    %p83 = scmp.eq.s32.totalorder %s23, 7
    %p84 = por %p82, %p83
    %p86 = scmp.ne.s32.totalorder %s69, %s85
    %p87 = scmp.eq.s32.totalorder %s23, 0
    %p88 = por %p86, %p87
    %s89 = ssub.s32 %s25, %s32
    %p90 = scmp.eq.s32.totalorder %s89, 0
    %s92 = sadd.s32 %s91, 1
    %s93 = scalar_select %p90, %s91, %s92
    %p96 = pneg %p90
    %p97 = scmp.eq.s32.totalorder %s17, 7
    %p98 = por %p96, %p97
    %p99 = scmp.ne.s32.totalorder %s91, %s94
    %p100 = scmp.eq.s32.totalorder %s17, 0
    %p101 = por %p99, %p100
    %p102 = scmp.ne.s32.totalorder %s91, %s94
    %p103 = scmp.eq.s32.totalorder %s22, 7
    %p104 = por %p102, %p103
    %p105 = scmp.ne.s32.totalorder %s94, %s95
    %p106 = scmp.eq.s32.totalorder %s22, 0
    %p107 = por %p105, %p106
    %p108 = scmp.ne.s32.totalorder %s94, %s95
    %p109 = scmp.eq.s32.totalorder %s23, 7
    %p110 = por %p108, %p109
    %p112 = scmp.ne.s32.totalorder %s95, %s111
    %p113 = scmp.eq.s32.totalorder %s23, 0
    %p114 = por %p112, %p113
    %s115 = ssub.s32 %s25, %s32
    %p116 = scmp.eq.s32.totalorder %s115, 0
    %s118 = sadd.s32 %s117, 1
    %s119 = scalar_select %p116, %s117, %s118
    %p122 = pneg %p116
    %p123 = scmp.eq.s32.totalorder %s17, 7
    %p124 = por %p122, %p123
    %p125 = scmp.ne.s32.totalorder %s117, %s120
    %p126 = scmp.eq.s32.totalorder %s17, 0
    %p127 = por %p125, %p126
    %p128 = scmp.ne.s32.totalorder %s117, %s120
    %p129 = scmp.eq.s32.totalorder %s22, 7
    %p130 = por %p128, %p129
    %p131 = scmp.ne.s32.totalorder %s120, %s121
    %p132 = scmp.eq.s32.totalorder %s22, 0
    %p133 = por %p131, %p132
    %p134 = scmp.ne.s32.totalorder %s120, %s121
    %p135 = scmp.eq.s32.totalorder %s23, 7
    %p136 = por %p134, %p135
    %p138 = scmp.ne.s32.totalorder %s121, %s137
    %p139 = scmp.eq.s32.totalorder %s23, 0
    %p140 = por %p138, %p139
    %s141 = ssub.s32 %s25, %s32
    %p142 = scmp.eq.s32.totalorder %s141, 0
    %s144 = sadd.s32 %s143, 1
    %s145 = scalar_select %p142, %s143, %s144
    %p148 = pneg %p142
    %p149 = scmp.eq.s32.totalorder %s17, 7
    %p150 = por %p148, %p149
    %p151 = scmp.ne.s32.totalorder %s143, %s146
    %p152 = scmp.eq.s32.totalorder %s17, 0
    %p153 = por %p151, %p152
    %p154 = scmp.ne.s32.totalorder %s143, %s146
    %p155 = scmp.eq.s32.totalorder %s22, 7
    %p156 = por %p154, %p155
    %p157 = scmp.ne.s32.totalorder %s146, %s147
    %p158 = scmp.eq.s32.totalorder %s22, 0
    %p159 = por %p157, %p158
    %p160 = scmp.ne.s32.totalorder %s146, %s147
    %p161 = scmp.eq.s32.totalorder %s23, 7
    %p162 = por %p160, %p161
    %p164 = scmp.ne.s32.totalorder %s147, %s163
    %p165 = scmp.eq.s32.totalorder %s23, 0
    %p166 = por %p164, %p165
    %s167 = ssub.s32 %s25, %s32
    %p168 = scmp.eq.s32.totalorder %s167, 0
    %s170 = sadd.s32 %s169, 1
    %s171 = scalar_select %p168, %s169, %s170
    %p174 = pneg %p168
    %p175 = scmp.eq.s32.totalorder %s17, 7
    %p176 = por %p174, %p175
    %p177 = scmp.ne.s32.totalorder %s169, %s172
    %p178 = scmp.eq.s32.totalorder %s17, 0
    %p179 = por %p177, %p178
    %p180 = scmp.ne.s32.totalorder %s169, %s172
    %p181 = scmp.eq.s32.totalorder %s22, 7
    %p182 = por %p180, %p181
    %p183 = scmp.ne.s32.totalorder %s172, %s173
    %p184 = scmp.eq.s32.totalorder %s22, 0
    %p185 = por %p183, %p184
    %p186 = scmp.ne.s32.totalorder %s172, %s173
    %p187 = scmp.eq.s32.totalorder %s23, 7
    %p188 = por %p186, %p187
    %p190 = scmp.ne.s32.totalorder %s173, %s189
    %p191 = scmp.eq.s32.totalorder %s23, 0
    %p192 = por %p190, %p191
    %s193 = ssub.s32 %s25, %s32
    %p194 = scmp.eq.s32.totalorder %s193, 0
    %s196 = sadd.s32 %s195, 1
    %s197 = scalar_select %p194, %s195, %s196
    %p200 = pneg %p194
    %p201 = scmp.eq.s32.totalorder %s17, 7
    %p202 = por %p200, %p201
    %p203 = scmp.ne.s32.totalorder %s195, %s198
    %p204 = scmp.eq.s32.totalorder %s17, 0
    %p205 = por %p203, %p204
    %p206 = scmp.ne.s32.totalorder %s195, %s198
    %p207 = scmp.eq.s32.totalorder %s22, 7
    %p208 = por %p206, %p207
    %p209 = scmp.ne.s32.totalorder %s198, %s199
    %p210 = scmp.eq.s32.totalorder %s22, 0
    %p211 = por %p209, %p210
    %p212 = scmp.ne.s32.totalorder %s198, %s199
    %p213 = scmp.eq.s32.totalorder %s23, 7
    %p214 = por %p212, %p213
    %p216 = scmp.ne.s32.totalorder %s199, %s215
    %p217 = scmp.eq.s32.totalorder %s23, 0
    %p218 = por %p216, %p217
    %s219 = ssub.s32 %s25, %s32
    %p220 = scmp.eq.s32.totalorder %s219, 0
    %s222 = sadd.s32 %s221, 1
    %s223 = scalar_select %p220, %s221, %s222
    %p226 = pneg %p220
    %p227 = scmp.eq.s32.totalorder %s17, 7
    %p228 = por %p226, %p227
    %p229 = scmp.ne.s32.totalorder %s221, %s224
    %p230 = scmp.eq.s32.totalorder %s17, 0
    %p231 = por %p229, %p230
    %p232 = scmp.ne.s32.totalorder %s221, %s224
    %p233 = scmp.eq.s32.totalorder %s22, 7
    %p234 = por %p232, %p233
    %p235 = scmp.ne.s32.totalorder %s224, %s225
    %p236 = scmp.eq.s32.totalorder %s22, 0
    %p237 = por %p235, %p236
    %p238 = scmp.ne.s32.totalorder %s224, %s225
    %p239 = scmp.eq.s32.totalorder %s23, 7
    %p240 = por %p238, %p239
    %p242 = scmp.ne.s32.totalorder %s225, %s241
    %p243 = scmp.eq.s32.totalorder %s23, 0
    %p244 = por %p242, %p243
    %s246 = sadd.s32 %s245, 1
    %p249 = scmp.eq.s32.totalorder %s17, 7
    %p250 = scmp.ne.s32.totalorder %s245, %s247
    %p251 = scmp.eq.s32.totalorder %s17, 0
    %p252 = por %p250, %p251
    %p253 = scmp.ne.s32.totalorder %s245, %s247
    %p254 = scmp.eq.s32.totalorder %s22, 7
    %p255 = por %p253, %p254
    %p256 = scmp.ne.s32.totalorder %s247, %s248
    %p257 = scmp.eq.s32.totalorder %s22, 0
    %p258 = por %p256, %p257
    %p259 = scmp.ne.s32.totalorder %s247, %s248
    %p260 = scmp.eq.s32.totalorder %s23, 7
    %p261 = por %p259, %p260
    %p263 = scmp.ne.s32.totalorder %s248, %s262
    %p264 = scmp.eq.s32.totalorder %s23, 0
    %p265 = por %p263, %p264
    %s267 = sadd.s32 %s266, 1
    %p270 = scmp.eq.s32.totalorder %s17, 7
    %p271 = scmp.ne.s32.totalorder %s266, %s268
    %p272 = scmp.eq.s32.totalorder %s17, 0
    %p273 = por %p271, %p272
    %p274 = scmp.ne.s32.totalorder %s266, %s268
    %p275 = scmp.eq.s32.totalorder %s22, 7
    %p276 = por %p274, %p275
    %p277 = scmp.ne.s32.totalorder %s268, %s269
    %p278 = scmp.eq.s32.totalorder %s22, 0
    %p279 = por %p277, %p278
    %p280 = scmp.ne.s32.totalorder %s268, %s269
    %p281 = scmp.eq.s32.totalorder %s23, 7
    %p282 = por %p280, %p281
    %p284 = scmp.ne.s32.totalorder %s269, %s283
    %p285 = scmp.eq.s32.totalorder %s23, 0
    %p286 = por %p284, %p285
    %s288 = sadd.s32 %s287, 1
    %p291 = scmp.eq.s32.totalorder %s17, 7
    %p292 = scmp.ne.s32.totalorder %s287, %s289
    %p293 = scmp.eq.s32.totalorder %s17, 0
    %p294 = por %p292, %p293
    %p295 = scmp.ne.s32.totalorder %s287, %s289
    %p296 = scmp.eq.s32.totalorder %s22, 7
    %p297 = por %p295, %p296
    %p298 = scmp.ne.s32.totalorder %s289, %s290
    %p299 = scmp.eq.s32.totalorder %s22, 0
    %p300 = por %p298, %p299
    %p301 = scmp.ne.s32.totalorder %s289, %s290
    %p302 = scmp.eq.s32.totalorder %s23, 7
    %p303 = por %p301, %p302
    %p305 = scmp.ne.s32.totalorder %s290, %s304
    %p306 = scmp.eq.s32.totalorder %s23, 0
    %p307 = por %p305, %p306
    %s308 = ssub.s32 %s24, %s36
    %p309 = scmp.eq.s32.totalorder %s308, 0
    %s311 = sadd.s32 %s310, 1
    %s312 = scalar_select %p309, %s310, %s311
    %p315 = pneg %p309
    %p316 = scmp.eq.s32.totalorder %s17, 7
    %p317 = por %p315, %p316
    %p318 = scmp.ne.s32.totalorder %s310, %s313
    %p319 = scmp.eq.s32.totalorder %s17, 0
    %p320 = por %p318, %p319
    %p321 = scmp.ne.s32.totalorder %s310, %s313
    %p322 = scmp.eq.s32.totalorder %s22, 7
    %p323 = por %p321, %p322
    %p324 = scmp.ne.s32.totalorder %s313, %s314
    %p325 = scmp.eq.s32.totalorder %s22, 0
    %p326 = por %p324, %p325
    %p327 = scmp.ne.s32.totalorder %s313, %s314
    %p328 = scmp.eq.s32.totalorder %s23, 7
    %p329 = por %p327, %p328
    %p331 = scmp.ne.s32.totalorder %s314, %s330
    %p332 = scmp.eq.s32.totalorder %s23, 0
    %p333 = por %p331, %p332
    %p334 = scmp.le.s32.totalorder 1, %s17
    %p335 = scmp.lt.s32.totalorder %s17, 9
    %p336 = pnand %p334, %p335
    %p337 = pneg %p336
    // Predicated region
    $region9: #{svector_forward.8} parent=5 // pred_check
      _
    $region10: #{svector_forward.8} parent=5 // pred_check_branch
      %339 = sbr.rel (%p336) target = $region12
    $region11: #{svector_forward.8} parent=5 // pred_region
      %s340 = ssub.s32 %s17, 1
      // Predicated region
      $region13: #{svector_forward.8} parent=11 // pred_check
        %p341 = pneg %p258
      $region14: #{svector_forward.8} parent=11 // pred_check_branch
        %343 = sbr.rel (%p341) target = $region16
      $region15: #{svector_forward.8} parent=11 // pred_region
        _
      $region16: #{svector_forward.8} parent=11 // pred_fallthru
        _
      // Predicated region
      $region17: #{svector_forward.8} parent=11 // pred_check
        %p344 = pneg %p279
      $region18: #{svector_forward.8} parent=11 // pred_check_branch
        %346 = sbr.rel (%p344) target = $region20
      $region19: #{svector_forward.8} parent=11 // pred_region
        _
      $region20: #{svector_forward.8} parent=11 // pred_fallthru
        _
      // Predicated region
      $region21: #{svector_forward.8} parent=11 // pred_check
        %p347 = pneg %p300
      $region22: #{svector_forward.8} parent=11 // pred_check_branch
        %349 = sbr.rel (%p347) target = $region24
      $region23: #{svector_forward.8} parent=11 // pred_region
        _
      $region24: #{svector_forward.8} parent=11 // pred_fallthru
        _
    $region12: #{svector_forward.8} parent=5 // pred_fallthru
      _
    %p350 = scmp.lt.s32.totalorder %s17, 8
    // Predicated region
    $region25: #{svector_forward.8} parent=5 // pred_check
      %p351 = pneg %p350
    $region26: #{svector_forward.8} parent=5 // pred_check_branch
      %353 = sbr.rel (%p351) target = $region28
    $region27: #{svector_forward.8} parent=5 // pred_region
      // Predicated region
      $region29: #{svector_forward.8} parent=27 // pred_check
        %p354 = pneg %p49
      $region30: #{svector_forward.8} parent=27 // pred_check_branch
        %356 = sbr.rel (%p354) target = $region32
      $region31: #{svector_forward.8} parent=27 // pred_region
        %p357 = scmp.lt.s32.totalorder %s24, 1
        %s358 = scalar_select %p357, %s24, 1
        %s359 = smul.addr %s358, 8
        %s360 = scalar_lea.vmem %s0, %s359
      $region32: #{svector_forward.8} parent=27 // pred_fallthru
        _
      // Predicated region
      $region33: #{svector_forward.8} parent=27 // pred_check
        %p361 = pneg %p75
      $region34: #{svector_forward.8} parent=27 // pred_check_branch
        %363 = sbr.rel (%p361) target = $region36
      $region35: #{svector_forward.8} parent=27 // pred_region
        %p364 = scmp.lt.s32.totalorder %s25, 3
        %s365 = scalar_select %p364, %s25, 3
        %s366 = smul.addr %s365, 4
        %s367 = smul.addr %s366, 4
        %s368 = scalar_lea.vmem %s1, %s367
      $region36: #{svector_forward.8} parent=27 // pred_fallthru
        _
      // Predicated region
      $region37: #{svector_forward.8} parent=27 // pred_check
        %p369 = pneg %p101
      $region38: #{svector_forward.8} parent=27 // pred_check_branch
        %371 = sbr.rel (%p369) target = $region40
      $region39: #{svector_forward.8} parent=27 // pred_region
        %p372 = scmp.lt.s32.totalorder %s25, 3
        %s373 = scalar_select %p372, %s25, 3
        %s374 = smul.addr %s373, 4
        %s375 = smul.addr %s374, 4
        %s376 = scalar_lea.vmem %s2, %s375
      $region40: #{svector_forward.8} parent=27 // pred_fallthru
        _
      // Predicated region
      $region41: #{svector_forward.8} parent=27 // pred_check
        %p377 = pneg %p127
      $region42: #{svector_forward.8} parent=27 // pred_check_branch
        %379 = sbr.rel (%p377) target = $region44
      $region43: #{svector_forward.8} parent=27 // pred_region
        %p380 = scmp.lt.s32.totalorder %s25, 3
        %s381 = scalar_select %p380, %s25, 3
        %s382 = smul.addr %s381, 4
        %s383 = smul.addr %s382, 4
        %s384 = scalar_lea.vmem %s3, %s383
      $region44: #{svector_forward.8} parent=27 // pred_fallthru
        _
      // Predicated region
      $region45: #{svector_forward.8} parent=27 // pred_check
        %p385 = pneg %p153
      $region46: #{svector_forward.8} parent=27 // pred_check_branch
        %387 = sbr.rel (%p385) target = $region48
      $region47: #{svector_forward.8} parent=27 // pred_region
        %p388 = scmp.lt.s32.totalorder %s25, 3
        %s389 = scalar_select %p388, %s25, 3
        %s390 = scalar_lea.vmem %s4, %s389
      $region48: #{svector_forward.8} parent=27 // pred_fallthru
        _
      // Predicated region
      $region49: #{svector_forward.8} parent=27 // pred_check
        %p391 = pneg %p179
      $region50: #{svector_forward.8} parent=27 // pred_check_branch
        %393 = sbr.rel (%p391) target = $region52
      $region51: #{svector_forward.8} parent=27 // pred_region
        %p394 = scmp.lt.s32.totalorder %s25, 3
        %s395 = scalar_select %p394, %s25, 3
        %s396 = scalar_lea.vmem %s5, %s395
      $region52: #{svector_forward.8} parent=27 // pred_fallthru
        _
      // Predicated region
      $region53: #{svector_forward.8} parent=27 // pred_check
        %p397 = pneg %p205
      $region54: #{svector_forward.8} parent=27 // pred_check_branch
        %399 = sbr.rel (%p397) target = $region56
      $region55: #{svector_forward.8} parent=27 // pred_region
        %p400 = scmp.lt.s32.totalorder %s25, 3
        %s401 = scalar_select %p400, %s25, 3
        %s402 = scalar_lea.vmem %s6, %s401
      $region56: #{svector_forward.8} parent=27 // pred_fallthru
        _
      // Predicated region
      $region57: #{svector_forward.8} parent=27 // pred_check
        %p403 = pneg %p231
      $region58: #{svector_forward.8} parent=27 // pred_check_branch
        %405 = sbr.rel (%p403) target = $region60
      $region59: #{svector_forward.8} parent=27 // pred_region
        %p406 = scmp.lt.s32.totalorder %s25, 3
        %s407 = scalar_select %p406, %s25, 3
        %s408 = smul.addr %s407, 4
        %s409 = scalar_lea.vmem %s7, %s408
      $region60: #{svector_forward.8} parent=27 // pred_fallthru
        _
    $region28: #{svector_forward.8} parent=5 // pred_fallthru
      _
    %p410 = scmp.le.s32.totalorder 1, %s17
    %p411 = scmp.lt.s32.totalorder %s17, 9
    %p412 = pnand %p410, %p411
    %p413 = pneg %p412
    // Predicated region
    $region61: #{svector_forward.8} parent=5 // pred_check
      _
    $region62: #{svector_forward.8} parent=5 // pred_check_branch
      %415 = sbr.rel (%p412) target = $region64
    $region63: #{svector_forward.8} parent=5 // pred_region
      %s416 = ssub.s32 %s17, 1
      %p417 = scmp.lt.s32.totalorder %s26, 1
      %s418 = scalar_select %p417, %s26, 1
      %s419 = smul.addr %s418, 8
      %s420 = scalar_lea.vmem %s0, %s419
      %p421 = pneg %p55
      %p422 = pneg %p52
      %p423 = scmp.lt.s32.totalorder %s27, 3
      %s424 = scalar_select %p423, %s27, 3
      %s425 = smul.addr %s424, 4
      %s426 = smul.addr %s425, 4
      %s427 = scalar_lea.vmem %s1, %s426
      %p428 = pneg %p81
      %p429 = pneg %p78
      %p430 = scmp.lt.s32.totalorder %s27, 3
      %s431 = scalar_select %p430, %s27, 3
      %s432 = smul.addr %s431, 4
      %s433 = smul.addr %s432, 4
      %s434 = scalar_lea.vmem %s2, %s433
      %p435 = pneg %p107
      %p436 = pneg %p104
      %p437 = scmp.lt.s32.totalorder %s27, 3
      %s438 = scalar_select %p437, %s27, 3
      %s439 = smul.addr %s438, 4
      %s440 = smul.addr %s439, 4
      %s441 = scalar_lea.vmem %s3, %s440
      %p442 = pneg %p133
      %p443 = pneg %p130
      %p444 = scmp.lt.s32.totalorder %s27, 3
      %s445 = scalar_select %p444, %s27, 3
      %s446 = scalar_lea.vmem %s4, %s445
      %p447 = pneg %p159
      %p448 = pneg %p156
      %p449 = scmp.lt.s32.totalorder %s27, 3
      %s450 = scalar_select %p449, %s27, 3
      %s451 = scalar_lea.vmem %s5, %s450
      %p452 = pneg %p185
      %p453 = pneg %p182
      %p454 = scmp.lt.s32.totalorder %s27, 3
      %s455 = scalar_select %p454, %s27, 3
      %s456 = scalar_lea.vmem %s6, %s455
      %p457 = pneg %p211
      %p458 = pneg %p208
      %p459 = scmp.lt.s32.totalorder %s27, 3
      %s460 = scalar_select %p459, %s27, 3
      %s461 = smul.addr %s460, 4
      %s462 = scalar_lea.vmem %s7, %s461
      %p463 = pneg %p237
      %p464 = pneg %p234
      %p465 = pneg %p258
      %p466 = pneg %p255
      %p467 = pneg %p279
      %p468 = pneg %p276
      %p469 = pneg %p300
      %p470 = pneg %p297
      %p471 = pneg %p326
      %p472 = pneg %p323
      %p473 = scmp.lt.s32.totalorder %s26, 1
      %s474 = scalar_select %p473, %s26, 1
      %s475 = smul.addr %s474, 8
      %s476 = scalar_lea.vmem %s11, %s475
      %p477 = scmp.lt.s32.totalorder %s26, 1
      %s478 = scalar_select %p477, %s26, 1
      %s479 = smul.addr %s478, 8
      %s480 = scalar_lea.vmem %s0, %s479
      %p481 = scmp.lt.s32.totalorder %s27, 3
      %s482 = scalar_select %p481, %s27, 3
      %s483 = smul.addr %s482, 4
      %s484 = smul.addr %s483, 4
      %s485 = scalar_lea.vmem %s1, %s484
      %p486 = scmp.lt.s32.totalorder %s27, 3
      %s487 = scalar_select %p486, %s27, 3
      %s488 = smul.addr %s487, 4
      %s489 = smul.addr %s488, 4
      %s490 = scalar_lea.vmem %s2, %s489
      %p491 = scmp.lt.s32.totalorder %s27, 3
      %s492 = scalar_select %p491, %s27, 3
      %s493 = smul.addr %s492, 4
      %s494 = smul.addr %s493, 4
      %s495 = scalar_lea.vmem %s3, %s494
      %p496 = scmp.lt.s32.totalorder %s27, 3
      %s497 = scalar_select %p496, %s27, 3
      %s498 = scalar_lea.vmem %s4, %s497
      %p499 = scmp.lt.s32.totalorder %s27, 3
      %s500 = scalar_select %p499, %s27, 3
      %s501 = scalar_lea.vmem %s5, %s500
      %p502 = scmp.lt.s32.totalorder %s27, 3
      %s503 = scalar_select %p502, %s27, 3
      %s504 = scalar_lea.vmem %s6, %s503
      %p505 = scmp.lt.s32.totalorder %s27, 3
      %s506 = scalar_select %p505, %s27, 3
      %s507 = smul.addr %s506, 4
      %s508 = scalar_lea.vmem %s7, %s507
      %p509 = scmp.lt.s32.totalorder %s26, 1
      %s510 = scalar_select %p509, %s26, 1
      %s511 = smul.addr %s510, 8
      %s512 = scalar_lea.vmem %s11, %s511
      %p514 = scmp.eq.s32.totalorder %s27, 0
      // Predicated region
      $region65: #{svector_forward.8} parent=63 // pred_check
        %p515 = pneg %p514
      $region66: #{svector_forward.8} parent=63 // pred_check_branch
        %517 = sbr.rel (%p515) target = $region68
      $region67: #{svector_forward.8} parent=63 // pred_region
        %vm518 = vcmask 261120
        %519 = vst.msk [vmem:[#allocation2] sm:$0xff] %vm518, 0.0
      $region68: #{svector_forward.8} parent=63 // pred_fallthru
        _
      %v520 = vld [vmem:[%s480] sm:$0xff]
      %v521 = vpack.c.bf16 %v520, %v520
      %v522 = vld [vmem:[%s485] sm:$0xf]
      %v523 = vld [vmem:[%s485 + $0x4] sm:$0xf]
      %v524 = vld [vmem:[%s485 + $0x8] sm:$0xf]
      %v525 = vld [vmem:[%s485 + $0xc] sm:$0xf]
      %v526 = vld [vmem:[%s498] sm:$0x1]
      %v528 = vlaneseq
      %v529 = vshrl.u32 %v528, 7
      %v530 = vsub.s32 0, %v529
      %v531 = vrot.slane %v526, %v530
      %v537 = vunpack.c.l.b16 %v522
      %v538 = vunpack.c.l.b16 %v523
      %v539 = vunpack.c.l.b16 %v524
      %v540 = vunpack.c.l.b16 %v525
      %v541 = vpack.c.b16 %v538, %v537
      %v542 = vpack.c.b16 %v540, %v539
      %vm545 = vcmask 261120
      %v547 = vsel %vm545, %v521, 0
      %549 = vmatprep.subr.bf16.mxu0 0
      %550 = vmatpush1.bf16.msra.mxu0 0
      %551 = vmatprep.subr.bf16.mxu0 0
      %552 = vmatpush1.bf16.msra.mxu0 0
      %553 = vmatprep.subr.bf16.mxu0 0
      %554 = vmatpush1.bf16.msra.mxu0 0
      %555 = vmatprep.subr.bf16.mxu0 0
      %556 = vmatpush1.bf16.msra.mxu0 0
      %557 = vmatprep.subr.bf16.mxu0 0
      %558 = vmatpush1.bf16.msra.mxu0 0
      %559 = vmatprep.subr.bf16.mxu0 0
      %560 = vmatpush1.bf16.msra.mxu0 0
      %561 = vmatprep.subr.bf16.mxu0 0
      %562 = vmatpush1.bf16.msra.mxu0 %v542
      %563 = vmatprep.subr.bf16.mxu0 0
      %564 = vmatpush1.bf16.msra.mxu0 %v541
      %565 = vmatprep.subr.bf16.mxu0 0
      %566 = vmatpush2.bf16.msra.mxu0 0
      %567 = vmatprep.subr.bf16.mxu0 0
      %568 = vmatpush2.bf16.msra.mxu0 0
      %569 = vmatprep.subr.bf16.mxu0 0
      %570 = vmatpush2.bf16.msra.mxu0 0
      %571 = vmatprep.subr.bf16.mxu0 0
      %572 = vmatpush2.bf16.msra.mxu0 0
      %573 = vmatprep.subr.bf16.mxu0 0
      %574 = vmatpush2.bf16.msra.mxu0 0
      %575 = vmatprep.subr.bf16.mxu0 0
      %576 = vmatpush2.bf16.msra.mxu0 0
      %577 = vmatprep.subr.bf16.mxu0 0
      %578 = vmatpush2.bf16.msra.mxu0 0
      %579 = vmatprep.subr.bf16.mxu0 0
      %580 = vmatpush2.bf16.msra.mxu0 0
      %581 = vmatprep.mubr.bf16.mxu0 0
      %582 = vmatmul.mubr.bf16.gmra.mxu0 %v547
      %v583 = vpop.f32.mrf.mxu0
      %v584 = vadd.f32 %v531, %v583
      %v585 = vpop.f32.mrf.mxu0
      %v586 = vpop.f32.mrf.mxu0
      %v587 = vpop.f32.mrf.mxu0
      %588 = vdwg.mxu0
      %v589 = vld [vmem:[%s490] sm:$0xf]
      %v590 = vld [vmem:[%s490 + $0x4] sm:$0xf]
      %v591 = vld [vmem:[%s490 + $0x8] sm:$0xf]
      %v592 = vld [vmem:[%s490 + $0xc] sm:$0xf]
      %v593 = vld [vmem:[%s501] sm:$0x1]
      %v595 = vlaneseq
      %v596 = vshrl.u32 %v595, 7
      %v597 = vsub.s32 0, %v596
      %v598 = vrot.slane %v593, %v597
      %v604 = vunpack.c.l.b16 %v589
      %v605 = vunpack.c.l.b16 %v590
      %v606 = vunpack.c.l.b16 %v591
      %v607 = vunpack.c.l.b16 %v592
      %v608 = vpack.c.b16 %v605, %v604
      %v609 = vpack.c.b16 %v607, %v606
      %612 = vmatprep.subr.bf16.mxu0 0
      %613 = vmatpush1.bf16.msra.mxu0 0
      %614 = vmatprep.subr.bf16.mxu0 0
      %615 = vmatpush1.bf16.msra.mxu0 0
      %616 = vmatprep.subr.bf16.mxu0 0
      %617 = vmatpush1.bf16.msra.mxu0 0
      %618 = vmatprep.subr.bf16.mxu0 0
      %619 = vmatpush1.bf16.msra.mxu0 0
      %620 = vmatprep.subr.bf16.mxu0 0
      %621 = vmatpush1.bf16.msra.mxu0 0
      %622 = vmatprep.subr.bf16.mxu0 0
      %623 = vmatpush1.bf16.msra.mxu0 0
      %624 = vmatprep.subr.bf16.mxu0 0
      %625 = vmatpush1.bf16.msra.mxu0 %v609
      %626 = vmatprep.subr.bf16.mxu0 0
      %627 = vmatpush1.bf16.msra.mxu0 %v608
      %628 = vmatprep.subr.bf16.mxu0 0
      %629 = vmatpush2.bf16.msra.mxu0 0
      %630 = vmatprep.subr.bf16.mxu0 0
      %631 = vmatpush2.bf16.msra.mxu0 0
      %632 = vmatprep.subr.bf16.mxu0 0
      %633 = vmatpush2.bf16.msra.mxu0 0
      %634 = vmatprep.subr.bf16.mxu0 0
      %635 = vmatpush2.bf16.msra.mxu0 0
      %636 = vmatprep.subr.bf16.mxu0 0
      %637 = vmatpush2.bf16.msra.mxu0 0
      %638 = vmatprep.subr.bf16.mxu0 0
      %639 = vmatpush2.bf16.msra.mxu0 0
      %640 = vmatprep.subr.bf16.mxu0 0
      %641 = vmatpush2.bf16.msra.mxu0 0
      %642 = vmatprep.subr.bf16.mxu0 0
      %643 = vmatpush2.bf16.msra.mxu0 0
      %644 = vmatprep.mubr.bf16.mxu0 0
      %645 = vmatmul.mubr.bf16.gmra.mxu0 %v547
      %v646 = vpop.f32.mrf.mxu0
      %v647 = vadd.f32 %v598, %v646
      %v648 = vpop.f32.mrf.mxu0
      %v649 = vpop.f32.mrf.mxu0
      %v650 = vpop.f32.mrf.mxu0
      %651 = vdwg.mxu0
      %v652 = vld [vmem:[%s495] sm:$0xf]
      %v653 = vld [vmem:[%s495 + $0x4] sm:$0xf]
      %v654 = vld [vmem:[%s495 + $0x8] sm:$0xf]
      %v655 = vld [vmem:[%s495 + $0xc] sm:$0xf]
      %v656 = vld [vmem:[%s504] sm:$0x1]
      %v658 = vlaneseq
      %v659 = vshrl.u32 %v658, 7
      %v660 = vsub.s32 0, %v659
      %v661 = vrot.slane %v656, %v660
      %v667 = vunpack.c.l.b16 %v652
      %v668 = vunpack.c.l.b16 %v653
      %v669 = vunpack.c.l.b16 %v654
      %v670 = vunpack.c.l.b16 %v655
      %v671 = vpack.c.b16 %v668, %v667
      %v672 = vpack.c.b16 %v670, %v669
      %675 = vmatprep.subr.bf16.mxu0 0
      %676 = vmatpush1.bf16.msra.mxu0 0
      %677 = vmatprep.subr.bf16.mxu0 0
      %678 = vmatpush1.bf16.msra.mxu0 0
      %679 = vmatprep.subr.bf16.mxu0 0
      %680 = vmatpush1.bf16.msra.mxu0 0
      %681 = vmatprep.subr.bf16.mxu0 0
      %682 = vmatpush1.bf16.msra.mxu0 0
      %683 = vmatprep.subr.bf16.mxu0 0
      %684 = vmatpush1.bf16.msra.mxu0 0
      %685 = vmatprep.subr.bf16.mxu0 0
      %686 = vmatpush1.bf16.msra.mxu0 0
      %687 = vmatprep.subr.bf16.mxu0 0
      %688 = vmatpush1.bf16.msra.mxu0 %v672
      %689 = vmatprep.subr.bf16.mxu0 0
      %690 = vmatpush1.bf16.msra.mxu0 %v671
      %691 = vmatprep.subr.bf16.mxu0 0
      %692 = vmatpush2.bf16.msra.mxu0 0
      %693 = vmatprep.subr.bf16.mxu0 0
      %694 = vmatpush2.bf16.msra.mxu0 0
      %695 = vmatprep.subr.bf16.mxu0 0
      %696 = vmatpush2.bf16.msra.mxu0 0
      %697 = vmatprep.subr.bf16.mxu0 0
      %698 = vmatpush2.bf16.msra.mxu0 0
      %699 = vmatprep.subr.bf16.mxu0 0
      %700 = vmatpush2.bf16.msra.mxu0 0
      %701 = vmatprep.subr.bf16.mxu0 0
      %702 = vmatpush2.bf16.msra.mxu0 0
      %703 = vmatprep.subr.bf16.mxu0 0
      %704 = vmatpush2.bf16.msra.mxu0 0
      %705 = vmatprep.subr.bf16.mxu0 0
      %706 = vmatpush2.bf16.msra.mxu0 0
      %707 = vmatprep.mubr.bf16.mxu0 0
      %708 = vmatmul.mubr.bf16.gmra.mxu0 %v547
      %v709 = vpop.f32.mrf.mxu0
      %v710 = vadd.f32 %v661, %v709
      %v711 = vpop.f32.mrf.mxu0
      %v712 = vpop.f32.mrf.mxu0
      %v713 = vpop.f32.mrf.mxu0
      %714 = vdwg.mxu0
      %v715 = vpack.c.bf16 %v584, %v584
      %v716 = vpack.c.bf16 %v647, %v647
      %vm717 = vcmask 64512
      %v719 = vsel %vm717, %v715, 0
      %v722 = vsel %vm717, %v716, 0
      %724 = vmatprep.subr.bf16.mxu0 0
      %725 = vmatpush1.bf16.xpose.msra.mxu0 0
      %726 = vmatprep.subr.bf16.mxu0 0
      %727 = vmatpush1.bf16.xpose.msra.mxu0 0
      %728 = vmatprep.subr.bf16.mxu0 0
      %729 = vmatpush1.bf16.xpose.msra.mxu0 0
      %730 = vmatprep.subr.bf16.mxu0 0
      %731 = vmatpush1.bf16.xpose.msra.mxu0 0
      %732 = vmatprep.subr.bf16.mxu0 0
      %733 = vmatpush1.bf16.xpose.msra.mxu0 0
      %734 = vmatprep.subr.bf16.mxu0 0
      %735 = vmatpush1.bf16.xpose.msra.mxu0 0
      %736 = vmatprep.subr.bf16.mxu0 0
      %737 = vmatpush1.bf16.xpose.msra.mxu0 0
      %738 = vmatprep.subr.bf16.mxu0 0
      %739 = vmatpush1.bf16.xpose.msra.mxu0 %v722
      %740 = vmatprep.subr.bf16.mxu0 0
      %741 = vmatpush2.bf16.xpose.msra.mxu0 0
      %742 = vmatprep.subr.bf16.mxu0 0
      %743 = vmatpush2.bf16.xpose.msra.mxu0 0
      %744 = vmatprep.subr.bf16.mxu0 0
      %745 = vmatpush2.bf16.xpose.msra.mxu0 0
      %746 = vmatprep.subr.bf16.mxu0 0
      %747 = vmatpush2.bf16.xpose.msra.mxu0 0
      %748 = vmatprep.subr.bf16.mxu0 0
      %749 = vmatpush2.bf16.xpose.msra.mxu0 0
      %750 = vmatprep.subr.bf16.mxu0 0
      %751 = vmatpush2.bf16.xpose.msra.mxu0 0
      %752 = vmatprep.subr.bf16.mxu0 0
      %753 = vmatpush2.bf16.xpose.msra.mxu0 0
      %754 = vmatprep.subr.bf16.mxu0 0
      %755 = vmatpush2.bf16.xpose.msra.mxu0 0
      %756 = vmatprep.mubr.bf16.mxu0 0
      %757 = vmatmul.mubr.bf16.gmra.mxu0 %v719
      %v758 = vpop.f32.mrf.mxu0
      %v759 = vadd.f32 0.0, %v758
      %v760 = vpop.f32.mrf.mxu0
      %v761 = vpop.f32.mrf.mxu0
      %v762 = vpop.f32.mrf.mxu0
      %763 = vdwg.mxu0
      %v764 = vmul.f32 %v759, 0.35355338
      %v765 = vsel %vm717, %v764, -inf
      %766 = vmax.xlane.f32.xlu0 %v765
      %v767 = vpop.xlane.xlu0 %766
      %v768 = vsub.f32 %v764, %v767
      %v769 = vmul.f32 %v768, 1.442695
      %v770 = vpow.pop %v769
      %v771 = vsel %vm717, %v770, 0.0
      %772 = vadd.xlane.f32.xlu0 %v771
      %v773 = vpop.xlane.xlu0 %772
      %v774 = vrcp.pop %v773
      %v775 = vmul.f32 %v770, %v774
      %v776 = vpack.c.bf16 %v775, %v775
      %v777 = vpack.c.bf16 %v710, %v710
      %v779 = vsel %vm717, %v776, 0
      %vm781 = vcmask 1043456
      %v783 = vsel %vm781, %v777, 0
      %785 = vmatprep.subr.bf16.mxu0 0
      %786 = vmatpush1.bf16.msra.mxu0 0
      %787 = vmatprep.subr.bf16.mxu0 0
      %788 = vmatpush1.bf16.msra.mxu0 0
      %789 = vmatprep.subr.bf16.mxu0 0
      %790 = vmatpush1.bf16.msra.mxu0 0
      %791 = vmatprep.subr.bf16.mxu0 0
      %792 = vmatpush1.bf16.msra.mxu0 0
      %793 = vmatprep.subr.bf16.mxu0 0
      %794 = vmatpush1.bf16.msra.mxu0 0
      %795 = vmatprep.subr.bf16.mxu0 0
      %796 = vmatpush1.bf16.msra.mxu0 0
      %797 = vmatprep.subr.bf16.mxu0 0
      %798 = vmatpush1.bf16.msra.mxu0 0
      %799 = vmatprep.subr.bf16.mxu0 0
      %800 = vmatpush1.bf16.msra.mxu0 %v783
      %801 = vmatprep.subr.bf16.mxu0 0
      %802 = vmatpush2.bf16.msra.mxu0 0
      %803 = vmatprep.subr.bf16.mxu0 0
      %804 = vmatpush2.bf16.msra.mxu0 0
      %805 = vmatprep.subr.bf16.mxu0 0
      %806 = vmatpush2.bf16.msra.mxu0 0
      %807 = vmatprep.subr.bf16.mxu0 0
      %808 = vmatpush2.bf16.msra.mxu0 0
      %809 = vmatprep.subr.bf16.mxu0 0
      %810 = vmatpush2.bf16.msra.mxu0 0
      %811 = vmatprep.subr.bf16.mxu0 0
      %812 = vmatpush2.bf16.msra.mxu0 0
      %813 = vmatprep.subr.bf16.mxu0 0
      %814 = vmatpush2.bf16.msra.mxu0 0
      %815 = vmatprep.subr.bf16.mxu0 0
      %816 = vmatpush2.bf16.msra.mxu0 0
      %817 = vmatprep.mubr.bf16.mxu0 0
      %818 = vmatmul.mubr.bf16.gmra.mxu0 %v779
      %v819 = vpop.f32.mrf.mxu0
      %v820 = vadd.f32 0.0, %v819
      %v821 = vpop.f32.mrf.mxu0
      %v822 = vpop.f32.mrf.mxu0
      %v823 = vpop.f32.mrf.mxu0
      %824 = vdwg.mxu0
      %v825 = vld [vmem:[#allocation2] sm:$0xff]
      %v826 = vpack.c.bf16 %v820, %v820
      %v827 = vld [vmem:[%s508] sm:$0xf]
      %v829 = vsel %vm717, %v826, 0
      %v832 = vsel %vm781, %v827, 0
      %834 = vmatprep.subr.bf16.mxu0 0
      %835 = vmatpush1.bf16.msra.mxu0 0
      %836 = vmatprep.subr.bf16.mxu0 0
      %837 = vmatpush1.bf16.msra.mxu0 0
      %838 = vmatprep.subr.bf16.mxu0 0
      %839 = vmatpush1.bf16.msra.mxu0 0
      %840 = vmatprep.subr.bf16.mxu0 0
      %841 = vmatpush1.bf16.msra.mxu0 0
      %842 = vmatprep.subr.bf16.mxu0 0
      %843 = vmatpush1.bf16.msra.mxu0 0
      %844 = vmatprep.subr.bf16.mxu0 0
      %845 = vmatpush1.bf16.msra.mxu0 0
      %846 = vmatprep.subr.bf16.mxu0 0
      %847 = vmatpush1.bf16.msra.mxu0 0
      %848 = vmatprep.subr.bf16.mxu0 0
      %849 = vmatpush1.bf16.msra.mxu0 %v832
      %850 = vmatprep.subr.bf16.mxu0 0
      %851 = vmatpush2.bf16.msra.mxu0 0
      %852 = vmatprep.subr.bf16.mxu0 0
      %853 = vmatpush2.bf16.msra.mxu0 0
      %854 = vmatprep.subr.bf16.mxu0 0
      %855 = vmatpush2.bf16.msra.mxu0 0
      %856 = vmatprep.subr.bf16.mxu0 0
      %857 = vmatpush2.bf16.msra.mxu0 0
      %858 = vmatprep.subr.bf16.mxu0 0
      %859 = vmatpush2.bf16.msra.mxu0 0
      %860 = vmatprep.subr.bf16.mxu0 0
      %861 = vmatpush2.bf16.msra.mxu0 0
      %862 = vmatprep.subr.bf16.mxu0 0
      %863 = vmatpush2.bf16.msra.mxu0 0
      %864 = vmatprep.subr.bf16.mxu0 0
      %865 = vmatpush2.bf16.msra.mxu0 0
      %866 = vmatprep.mubr.bf16.mxu0 0
      %867 = vmatmul.mubr.bf16.gmra.mxu0 %v829
      %v868 = vpop.f32.mrf.mxu0
      %v869 = vadd.f32 0.0, %v868
      %v870 = vpop.f32.mrf.mxu0
      %v871 = vpop.f32.mrf.mxu0
      %v872 = vpop.f32.mrf.mxu0
      %873 = vdwg.mxu0
      %v874 = vadd.f32 %v825, %v869
      %875 = vst.msk [vmem:[#allocation2] sm:$0xff] %vm545, %v874
      %p876 = scmp.eq.s32.totalorder %s27, 3
      // Predicated region
      $region69: #{svector_forward.8} parent=63 // pred_check
        %p877 = pneg %p876
      $region70: #{svector_forward.8} parent=63 // pred_check_branch
        %879 = sbr.rel (%p877) target = $region72
      $region71: #{svector_forward.8} parent=63 // pred_region
        %v880 = vld [vmem:[#allocation2] sm:$0xff]
        %v881 = vld [vmem:[%s8] sm:$0x1]
        %v883 = vlaneseq
        %v884 = vshrl.u32 %v883, 7
        %v885 = vsub.s32 0, %v884
        %v886 = vrot.slane %v881, %v885
        %v888 = vadd.f32 %v880, %v886
        %v889 = vld [vmem:[%s480] sm:$0xff]
        %v890 = vadd.f32 %v888, %v889
        %v891 = vsel %vm545, %v890, 0.0
        %892 = vadd.xlane.f32.xlu0 %v891
        %v893 = vpop.xlane.xlu0 %892
        %v894 = vrcp.pop 32.0
        %v895 = vmul.f32 %v893, %v894
        %v896 = vsub.f32 %v890, %v895
        %v897 = vmul.f32 %v896, %v896
        %v898 = vsel %vm545, %v897, 0.0
        %899 = vadd.xlane.f32.xlu0 %v898
        %v900 = vpop.xlane.xlu0 %899
        %v901 = vmul.f32 %v900, %v894
        %v902 = vadd.f32 %v901, 1e-05
        %v903 = vrsqrt.pop %v902
        %v904 = vmul.f32 %v896, %v903
        %v905 = vld [vmem:[%s9] sm:$0x1]
        %v907 = vlaneseq
        %v908 = vshrl.u32 %v907, 7
        %v909 = vsub.s32 0, %v908
        %v910 = vrot.slane %v905, %v909
        %v912 = vmul.f32 %v904, %v910
        %v913 = vld [vmem:[%s10] sm:$0x1]
        %v915 = vlaneseq
        %v916 = vshrl.u32 %v915, 7
        %v917 = vsub.s32 0, %v916
        %v918 = vrot.slane %v913, %v917
        %v920 = vadd.f32 %v912, %v918
        %921 = vst.msk [vmem:[%s512] sm:$0xff] %vm545, %v920
      $region72: #{svector_forward.8} parent=63 // pred_fallthru
        _
      %p922 = scmp.lt.s32.totalorder %s26, 1
      %s923 = scalar_select %p922, %s26, 1
      %s924 = smul.addr %s923, 8
      %s925 = scalar_lea.vmem %s11, %s924
      // Predicated region
      $region73: #{svector_forward.8} parent=63 // pred_check
        %p926 = pneg %p323
      $region74: #{svector_forward.8} parent=63 // pred_check_branch
        %928 = sbr.rel (%p926) target = $region76
      $region75: #{svector_forward.8} parent=63 // pred_region
        _
      $region76: #{svector_forward.8} parent=63 // pred_fallthru
        _
    $region64: #{svector_forward.8} parent=5 // pred_fallthru
      _
    %p929 = scmp.le.s32.totalorder 2, %s17
    // Predicated region
    $region77: #{svector_forward.8} parent=5 // pred_check
      %p930 = pneg %p929
    $region78: #{svector_forward.8} parent=5 // pred_check_branch
      %932 = sbr.rel (%p930) target = $region80
    $region79: #{svector_forward.8} parent=5 // pred_region
      %s933 = ssub.s32 %s17, 2
      // Predicated region
      $region81: #{svector_forward.8} parent=79 // pred_check
        %p934 = pneg %p329
      $region82: #{svector_forward.8} parent=79 // pred_check_branch
        %936 = sbr.rel (%p934) target = $region84
      $region83: #{svector_forward.8} parent=79 // pred_region
        %p937 = scmp.lt.s32.totalorder %s28, 1
        %s938 = scalar_select %p937, %s28, 1
        %s939 = smul.addr %s938, 8
        %s940 = scalar_lea.vmem %s11, %s939
      $region84: #{svector_forward.8} parent=79 // pred_fallthru
        _
    $region80: #{svector_forward.8} parent=5 // pred_fallthru
      _
  $region6: #{svector_forward.8} parent=0 // loop_footer
    %s21 = sadd.s32 1, %s17
  $region7: #{svector_forward.8} parent=0 // loop_footer_branch
    %16 = sbr.rel target = $region3
  $region8: #{svector_forward.8} parent=0 // loop_exit
    _

// kernel: svector_forward.13
$region0: #{svector_forward.13}
  #allocation0 [shape = 'u32[]', space=smem, size = 0x4, offset = 0x4, fixed_abs, tag = 'smem constant byte address 0x4 - core index']
  #allocation1 [shape = 'u32[144,128]{1,0:T(1,128)}', space=vmem, size = 0x12000, scoped, tag = 'internal scratch']
  #allocation2 [shape = 'f32[2,128]{1,0:T(2,128)}', space=vmem, size = 0x400, scoped, tag = 'scratch operand']
  #allocation3 [shape = 'f32[2,128]{1,0:T(2,128)}', space=vmem, size = 0x400, scoped, tag = 'scratch operand']
  %s0 = inlined_call_operand.vmem [shape: f32[2,8,128], index: 0, kind: input, shape index: {}]
  %s1 = inlined_call_operand.vmem [shape: bf16[128,32], index: 1, kind: input, shape index: {}]
  %s2 = inlined_call_operand.vmem [shape: bf16[128,32], index: 2, kind: input, shape index: {}]
  %s3 = inlined_call_operand.vmem [shape: f32[1,32], index: 3, kind: input, shape index: {}]
  %s4 = inlined_call_operand.hbm [shape: f32[2,32], index: 4, kind: output, shape index: {}]
  %s5 = sld [smem:[#allocation0]]
  $region34: #{svector_forward.13} parent=0
    _
  %s7 = ssub.s32 1, %s5
  %s8 = scalar_select 0, %s7, %s5
  $region1: #{svector_forward.13} parent=0
    #allocation4 [shape = 'u8[1024]{0}', space=vmem, size = 0x400, scoped, tag = 'output window, operand 0, single buffered']
    #allocation5 [shape = 's32[1]{0}', space=sflag, size = 0x4, scoped, tag = 'scoped memory for svector_forward.13']
    %9 = vsyncpa [#allocation5], 0
    // Predicated region
    $region2: #{svector_forward.13} parent=1 // pred_check
      _
    $region3: #{svector_forward.13} parent=1 // pred_check_branch
      %11 = sbr.rel (0) target = $region5
    $region4: #{svector_forward.13} parent=1 // pred_region
      _
    $region5: #{svector_forward.13} parent=1 // pred_fallthru
      _
    // Predicated region
    $region6: #{svector_forward.13} parent=1 // pred_check
      _
    $region7: #{svector_forward.13} parent=1 // pred_check_branch
      %13 = sbr.rel (0) target = $region9
    $region8: #{svector_forward.13} parent=1 // pred_region
      _
    $region9: #{svector_forward.13} parent=1 // pred_fallthru
      _
    // Predicated region
    $region10: #{svector_forward.13} parent=1 // pred_check
      _
    $region11: #{svector_forward.13} parent=1 // pred_check_branch
      %15 = sbr.rel (0) target = $region13
    $region12: #{svector_forward.13} parent=1 // pred_region
      _
    $region13: #{svector_forward.13} parent=1 // pred_fallthru
      _
    // Predicated region
    $region14: #{svector_forward.13} parent=1 // pred_check
      _
    $region15: #{svector_forward.13} parent=1 // pred_check_branch
      %17 = sbr.rel (0) target = $region17
    $region16: #{svector_forward.13} parent=1 // pred_region
      _
    $region17: #{svector_forward.13} parent=1 // pred_fallthru
      _
    %p19 = scmp.eq.s32.totalorder 0, 0
    // Predicated region
    $region18: #{svector_forward.13} parent=1 // pred_check
      %p20 = pneg %p19
    $region19: #{svector_forward.13} parent=1 // pred_check_branch
      %22 = sbr.rel (%p20) target = $region21
    $region20: #{svector_forward.13} parent=1 // pred_region
      %23 = vst [vmem:[#allocation2] sm:$0x3] 0.0
      %24 = vst [vmem:[#allocation3] sm:$0x3] 0.0
    $region21: #{svector_forward.13} parent=1 // pred_fallthru
      _
    %v25 = vld [vmem:[%s0] sm:$0xff]
    %v26 = vld [vmem:[%s0 + $0x8] sm:$0xff]
    %s27 = smul.u32 0, 8
    %v28 = vlaneseq
    %v29 = vshrl.u32 %v28, 7
    %v30 = vstv %s27
    %v31 = vadd.s32 %v30, %v29
    %vm32 = vcmp.lt.s32.totalorder %v31, 8
    %v33 = vsel %vm32, 1, 0
    %vm34 = vcmp.eq.s32.totalorder %v33, 1
    %v35 = vsel %vm34, %v25, 0.0
    %v36 = vsel %vm34, %v26, 0.0
    %v37 = vld [vmem:[#allocation2] sm:$0x3]
    %v38 = vrot.slane %v35, 4
    %v39 = vadd.f32 %v35, %v38
    %v40 = vrot.slane %v39, 2
    %v41 = vadd.f32 %v39, %v40
    %v42 = vrot.slane %v41, 1
    %v43 = vadd.f32 %v41, %v42
    %v44 = vrot.slane %v36, 4
    %v45 = vadd.f32 %v36, %v44
    %v46 = vrot.slane %v45, 2
    %v47 = vadd.f32 %v45, %v46
    %v48 = vrot.slane %v47, 1
    %v49 = vadd.f32 %v47, %v48
    %vm52 = vcmask 1041409
    %v53 = vsel %vm52, %v49, %v43
    %v55 = vadd.f32 %v37, %v53
    %56 = vst [vmem:[#allocation2] sm:$0x3] %v55
    %v57 = vld [vmem:[#allocation3] sm:$0x3]
    %v58 = vmul.f32 %v35, %v35
    %v59 = vmul.f32 %v36, %v36
    %v60 = vrot.slane %v58, 4
    %v61 = vadd.f32 %v58, %v60
    %v62 = vrot.slane %v61, 2
    %v63 = vadd.f32 %v61, %v62
    %v64 = vrot.slane %v63, 1
    %v65 = vadd.f32 %v63, %v64
    %v66 = vrot.slane %v59, 4
    %v67 = vadd.f32 %v59, %v66
    %v68 = vrot.slane %v67, 2
    %v69 = vadd.f32 %v67, %v68
    %v70 = vrot.slane %v69, 1
    %v71 = vadd.f32 %v69, %v70
    %v74 = vsel %vm52, %v71, %v65
    %v76 = vadd.f32 %v57, %v74
    %77 = vst [vmem:[#allocation3] sm:$0x3] %v76
    // Predicated region
    $region22: #{svector_forward.13} parent=1 // pred_check
      %p78 = pneg %p19
    $region23: #{svector_forward.13} parent=1 // pred_check_branch
      %80 = sbr.rel (%p78) target = $region25
    $region24: #{svector_forward.13} parent=1 // pred_region
      %v81 = vld [vmem:[#allocation2] sm:$0x3]
      %v82 = vrcp.pop 8.0
      %v83 = vmul.f32 %v81, %v82
      %v84 = vld [vmem:[#allocation3] sm:$0x3]
      %v85 = vmul.f32 %v83, 8.0
      %v86 = vmul.f32 %v85, %v83
      %v87 = vsub.f32 %v84, %v86
      %v88 = vrcp.pop 7.0
      %v89 = vmul.f32 %v87, %v88
      %v90 = vmax.f32 %v89, 0.0
      %v91 = vrsqrt.pop %v90
      %v92 = vmul.f32 %v90, %v91
      %vm93 = vcmp.eq.f32.partialorder %v90, inf
      %v94 = vsel %vm93, %v90, %v92
      %vm95 = vcmp.eq.f32.partialorder %v90, 0.0
      %v96 = vand.u32 %v90, 2147483648
      %v97 = vsel %vm95, %v96, %v94
      %v98 = vpack.c.bf16 %v83, %v83
      %v99 = vld [vmem:[%s1] sm:$0xf]
      %v100 = vld [vmem:[%s1 + $0x4] sm:$0xf]
      %v101 = vld [vmem:[%s1 + $0x8] sm:$0xf]
      %v102 = vld [vmem:[%s1 + $0xc] sm:$0xf]
      %v103 = vld [vmem:[%s1 + $0x10] sm:$0xf]
      %v104 = vld [vmem:[%s1 + $0x14] sm:$0xf]
      %v105 = vld [vmem:[%s1 + $0x18] sm:$0xf]
      %v106 = vld [vmem:[%s1 + $0x1c] sm:$0xf]
      %v107 = vld [vmem:[%s1 + $0x20] sm:$0xf]
      %v108 = vld [vmem:[%s1 + $0x24] sm:$0xf]
      %v109 = vld [vmem:[%s1 + $0x28] sm:$0xf]
      %v110 = vld [vmem:[%s1 + $0x2c] sm:$0xf]
      %v111 = vld [vmem:[%s1 + $0x30] sm:$0xf]
      %v112 = vld [vmem:[%s1 + $0x34] sm:$0xf]
      %v113 = vld [vmem:[%s1 + $0x38] sm:$0xf]
      %v114 = vld [vmem:[%s1 + $0x3c] sm:$0xf]
      %v115 = vpack.c.bf16 %v97, %v97
      %v116 = vld [vmem:[%s2] sm:$0xf]
      %v117 = vld [vmem:[%s2 + $0x4] sm:$0xf]
      %v118 = vld [vmem:[%s2 + $0x8] sm:$0xf]
      %v119 = vld [vmem:[%s2 + $0xc] sm:$0xf]
      %v120 = vld [vmem:[%s2 + $0x10] sm:$0xf]
      %v121 = vld [vmem:[%s2 + $0x14] sm:$0xf]
      %v122 = vld [vmem:[%s2 + $0x18] sm:$0xf]
      %v123 = vld [vmem:[%s2 + $0x1c] sm:$0xf]
      %v124 = vld [vmem:[%s2 + $0x20] sm:$0xf]
      %v125 = vld [vmem:[%s2 + $0x24] sm:$0xf]
      %v126 = vld [vmem:[%s2 + $0x28] sm:$0xf]
      %v127 = vld [vmem:[%s2 + $0x2c] sm:$0xf]
      %v128 = vld [vmem:[%s2 + $0x30] sm:$0xf]
      %v129 = vld [vmem:[%s2 + $0x34] sm:$0xf]
      %v130 = vld [vmem:[%s2 + $0x38] sm:$0xf]
      %v131 = vld [vmem:[%s2 + $0x3c] sm:$0xf]
      %v148 = vunpack.c.l.b16 %v116
      %v149 = vunpack.c.l.b16 %v117
      %v150 = vunpack.c.l.b16 %v118
      %v151 = vunpack.c.l.b16 %v119
      %v152 = vunpack.c.l.b16 %v120
      %v153 = vunpack.c.l.b16 %v121
      %v154 = vunpack.c.l.b16 %v122
      %v155 = vunpack.c.l.b16 %v123
      %v156 = vunpack.c.l.b16 %v124
      %v157 = vunpack.c.l.b16 %v125
      %v158 = vunpack.c.l.b16 %v126
      %v159 = vunpack.c.l.b16 %v127
      %v160 = vunpack.c.l.b16 %v128
      %v161 = vunpack.c.l.b16 %v129
      %v162 = vunpack.c.l.b16 %v130
      %v163 = vunpack.c.l.b16 %v131
      %v164 = vpack.c.b16 %v149, %v148
      %v165 = vpack.c.b16 %v151, %v150
      %v166 = vpack.c.b16 %v153, %v152
      %v167 = vpack.c.b16 %v155, %v154
      %v168 = vpack.c.b16 %v157, %v156
      %v169 = vpack.c.b16 %v159, %v158
      %v170 = vpack.c.b16 %v161, %v160
      %v171 = vpack.c.b16 %v163, %v162
      %180 = vmatprep.subr.bf16.mxu0 0
      %181 = vmatpush1.bf16.msra.mxu0 %v171
      %182 = vmatprep.subr.bf16.mxu0 0
      %183 = vmatpush1.bf16.msra.mxu0 %v170
      %184 = vmatprep.subr.bf16.mxu0 0
      %185 = vmatpush1.bf16.msra.mxu0 %v169
      %186 = vmatprep.subr.bf16.mxu0 0
      %187 = vmatpush1.bf16.msra.mxu0 %v168
      %188 = vmatprep.subr.bf16.mxu0 0
      %189 = vmatpush1.bf16.msra.mxu0 %v167
      %190 = vmatprep.subr.bf16.mxu0 0
      %191 = vmatpush1.bf16.msra.mxu0 %v166
      %192 = vmatprep.subr.bf16.mxu0 0
      %193 = vmatpush1.bf16.msra.mxu0 %v165
      %194 = vmatprep.subr.bf16.mxu0 0
      %195 = vmatpush1.bf16.msra.mxu0 %v164
      %196 = vmatprep.subr.bf16.mxu0 0
      %197 = vmatpush2.bf16.msra.mxu0 0
      %198 = vmatprep.subr.bf16.mxu0 0
      %199 = vmatpush2.bf16.msra.mxu0 0
      %200 = vmatprep.subr.bf16.mxu0 0
      %201 = vmatpush2.bf16.msra.mxu0 0
      %202 = vmatprep.subr.bf16.mxu0 0
      %203 = vmatpush2.bf16.msra.mxu0 0
      %204 = vmatprep.subr.bf16.mxu0 0
      %205 = vmatpush2.bf16.msra.mxu0 0
      %206 = vmatprep.subr.bf16.mxu0 0
      %207 = vmatpush2.bf16.msra.mxu0 0
      %208 = vmatprep.subr.bf16.mxu0 0
      %209 = vmatpush2.bf16.msra.mxu0 0
      %210 = vmatprep.subr.bf16.mxu0 0
      %211 = vmatpush2.bf16.msra.mxu0 0
      %212 = vmatprep.mubr.bf16.mxu0 0
      %213 = vmatmul.mubr.bf16.gmra.mxu0 %v115
      %v214 = vpop.f32.mrf.mxu0
      %v215 = vadd.f32 0.0, %v214
      %v216 = vpop.f32.mrf.mxu0
      %v217 = vpop.f32.mrf.mxu0
      %v218 = vpop.f32.mrf.mxu0
      %219 = vdwg.mxu0
      %v236 = vunpack.c.l.b16 %v99
      %v237 = vunpack.c.l.b16 %v100
      %v238 = vunpack.c.l.b16 %v101
      %v239 = vunpack.c.l.b16 %v102
      %v240 = vunpack.c.l.b16 %v103
      %v241 = vunpack.c.l.b16 %v104
      %v242 = vunpack.c.l.b16 %v105
      %v243 = vunpack.c.l.b16 %v106
      %v244 = vunpack.c.l.b16 %v107
      %v245 = vunpack.c.l.b16 %v108
      %v246 = vunpack.c.l.b16 %v109
      %v247 = vunpack.c.l.b16 %v110
      %v248 = vunpack.c.l.b16 %v111
      %v249 = vunpack.c.l.b16 %v112
      %v250 = vunpack.c.l.b16 %v113
      %v251 = vunpack.c.l.b16 %v114
      %v252 = vpack.c.b16 %v237, %v236
      %v253 = vpack.c.b16 %v239, %v238
      %v254 = vpack.c.b16 %v241, %v240
      %v255 = vpack.c.b16 %v243, %v242
      %v256 = vpack.c.b16 %v245, %v244
      %v257 = vpack.c.b16 %v247, %v246
      %v258 = vpack.c.b16 %v249, %v248
      %v259 = vpack.c.b16 %v251, %v250
      %268 = vmatprep.subr.bf16.mxu0 0
      %269 = vmatpush1.bf16.msra.mxu0 %v259
      %270 = vmatprep.subr.bf16.mxu0 0
      %271 = vmatpush1.bf16.msra.mxu0 %v258
      %272 = vmatprep.subr.bf16.mxu0 0
      %273 = vmatpush1.bf16.msra.mxu0 %v257
      %274 = vmatprep.subr.bf16.mxu0 0
      %275 = vmatpush1.bf16.msra.mxu0 %v256
      %276 = vmatprep.subr.bf16.mxu0 0
      %277 = vmatpush1.bf16.msra.mxu0 %v255
      %278 = vmatprep.subr.bf16.mxu0 0
      %279 = vmatpush1.bf16.msra.mxu0 %v254
      %280 = vmatprep.subr.bf16.mxu0 0
      %281 = vmatpush1.bf16.msra.mxu0 %v253
      %282 = vmatprep.subr.bf16.mxu0 0
      %283 = vmatpush1.bf16.msra.mxu0 %v252
      %284 = vmatprep.subr.bf16.mxu0 0
      %285 = vmatpush2.bf16.msra.mxu0 0
      %286 = vmatprep.subr.bf16.mxu0 0
      %287 = vmatpush2.bf16.msra.mxu0 0
      %288 = vmatprep.subr.bf16.mxu0 0
      %289 = vmatpush2.bf16.msra.mxu0 0
      %290 = vmatprep.subr.bf16.mxu0 0
      %291 = vmatpush2.bf16.msra.mxu0 0
      %292 = vmatprep.subr.bf16.mxu0 0
      %293 = vmatpush2.bf16.msra.mxu0 0
      %294 = vmatprep.subr.bf16.mxu0 0
      %295 = vmatpush2.bf16.msra.mxu0 0
      %296 = vmatprep.subr.bf16.mxu0 0
      %297 = vmatpush2.bf16.msra.mxu0 0
      %298 = vmatprep.subr.bf16.mxu0 0
      %299 = vmatpush2.bf16.msra.mxu0 0
      %300 = vmatprep.mubr.bf16.mxu0 0
      %301 = vmatmul.mubr.bf16.gmra.mxu0 %v98
      %v302 = vpop.f32.mrf.mxu0
      %v303 = vadd.f32 %v215, %v302
      %v304 = vpop.f32.mrf.mxu0
      %v305 = vpop.f32.mrf.mxu0
      %v306 = vpop.f32.mrf.mxu0
      %307 = vdwg.mxu0
      %v308 = vld [vmem:[%s3] sm:$0x1]
      %v310 = vlaneseq
      %v311 = vshrl.u32 %v310, 7
      %v312 = vsub.s32 0, %v311
      %v313 = vrot.slane %v308, %v312
      %v315 = vadd.f32 %v303, %v313
      %v316 = vmax.f32 %v315, 0.0
      %vm317 = vcmask 254976
      %318 = vst.msk [vmem:[#allocation4] sm:$0x3] %vm317, %v316
    $region25: #{svector_forward.13} parent=1 // pred_fallthru
      _
    // Predicated region
    $region26: #{svector_forward.13} parent=1 // pred_check
      _
    $region27: #{svector_forward.13} parent=1 // pred_check_branch
      %320 = sbr.rel (0) target = $region29
    $region28: #{svector_forward.13} parent=1 // pred_region
      %s322 = ssub.s32 32, 32
      %323 = vsyncadd [#allocation5], %s322
      %s325 = sshll.u32 [#allocation4], 4
      %s326 = int_to_ptr.vmem [resolvable:$true] %s325
      %328 = dma.vmem_to_hbm [thread:$0]  %s326, 32, %s4, [#allocation5]
    $region29: #{svector_forward.13} parent=1 // pred_fallthru
      _
    // Predicated region
    $region30: #{svector_forward.13} parent=1 // pred_check
      _
    $region31: #{svector_forward.13} parent=1 // pred_check_branch
      %330 = sbr.rel (0) target = $region33
    $region32: #{svector_forward.13} parent=1 // pred_region
      %331 = dma.done [#allocation5], 32
    $region33: #{svector_forward.13} parent=1 // pred_fallthru
      _
    %332 = vsyncpa [#allocation5], 1

</llo_original>
